<compile_context>
chip_gen: v5e
topology: v5e:2x2
jax: 0.10.0
libtpu: 0.0.40
codegen_flags: <defaults>
</compile_context>

<pallas_src>
import math
import numpy as np
import jax
import jax.numpy as jnp
from jax import lax
from jax.experimental import pallas as pl
from jax.experimental.pallas import tpu as pltpu


def _sigmoid(z):
    return 1.0 / (1.0 + jnp.exp(-z))


def cbam_sca_kernel(bszt_ref,                 # SMEM int32 [Tmax] (scalar prefetch): batch_size_t per step
                    pooled_ref,               # (Bp, C)   avg-pooled image feature
                    cap_ref,                  # (Tm1*Bp, F) caption embeddings, time-major, flattened
                    wf2hc_ref, bf2hc_ref,     # (C, 2H), (1, 2H)  stacked f2h|f2c
                    wih_ref, bg_ref,          # (F, 4H), (1, 4H)
                    whh_ref,                  # (H, 4H)
                    wcls_ref, bcls_ref,       # (H, Vp), (1, Vp)  lane-padded classifier
                    pred_ref,                 # out: (Tmax*Bp, Vp)
                    pg_ref,                   # scratch (Tm1*Bp, 4H): precomputed input gates
                    hbuf_ref,                 # scratch (Tm1*Bp, H): masked h_new per step
                    mbuf_ref):                # scratch (Tm1*Bp, 1): activity mask per step
    Bp = pooled_ref.shape[0]
    H = whh_ref.shape[0]
    Tm1Bp = hbuf_ref.shape[0]
    Tm1 = Tm1Bp // Bp
    Vp = pred_ref.shape[1]

    # ---- prologue: fused h0/c0 init (one MXU pass) ----
    hc0 = jnp.dot(pooled_ref[...], wf2hc_ref[...],
                  preferred_element_type=jnp.float32) + bf2hc_ref[...]          # (Bp, 2H)
    h0 = hc0[:, :H]
    c0 = hc0[:, H:]

    # ---- precompute input projection for all timesteps (one batched MXU pass) ----
    pg_ref[...] = jnp.dot(cap_ref[...], wih_ref[...],
                          preferred_element_type=jnp.float32) + bg_ref[...]     # (Tm1*Bp, 4H)

    whh = whh_ref[...]
    row = lax.broadcasted_iota(jnp.int32, (Bp, 1), 0)

    def step(t, carry):
        h, c = carry
        active = row < bszt_ref[t]                      # rows b < batch_size_t (lengths sorted desc)
        start = pl.multiple_of(t * Bp, Bp)
        gates = pg_ref[pl.ds(start, Bp), :] + jnp.dot(h, whh,
                                                      preferred_element_type=jnp.float32)  # (Bp, 4H)
        sig = _sigmoid(gates)                           # one full-vreg EUP pass
        i = sig[:, 0:H]
        f = sig[:, H:2 * H]
        o = sig[:, 3 * H:4 * H]
        g = jnp.tanh(gates[:, 2 * H:3 * H])
        c_new = f * c + i * g
        h_new = o * jnp.tanh(c_new)
        # stash masked h_new + activity mask; classifier is applied after the loop
        hbuf_ref[pl.ds(start, Bp), :] = jnp.where(active, h_new, 0.0)
        mbuf_ref[pl.ds(start, Bp), :] = active.astype(jnp.float32)
        # only active rows advance their LSTM state (truncated-batch semantics)
        h = jnp.where(active, h_new, h)
        c = jnp.where(active, c_new, c)
        return h, c

    lax.fori_loop(0, Tm1, step, (h0, c0), unroll=True)

    # ---- deferred classifier: one batched matmul + single lane-dense slab store ----
    # Dropout(p=0.5) is identity in eval mode.
    ow = jnp.dot(hbuf_ref[...], wcls_ref[...],
                 preferred_element_type=jnp.float32)                            # (Tm1*Bp, Vp)
    pred_ref[pl.ds(0, Tm1Bp), :] = ow + mbuf_ref[...] * bcls_ref[...]
    pred_ref[pl.ds(Tm1Bp, Bp), :] = jnp.zeros((Bp, Vp), jnp.float32)            # last timestep stays zero


def _round_up(x, m):
    return ((x + m - 1) // m) * m


def cbam_sca_forward(x, caption, mask, params, Tmax):
    B, C, hh, ww = x.shape
    F = params["emb"].shape[1]
    H = params["wf2h"].shape[1]
    V = params["wcls"].shape[1]

    if Tmax < 2:
        # PyTorch loop body never executes; predictions stay zero.
        return jnp.zeros((B, Tmax, V), jnp.float32)

    Bp = _round_up(B, 8)        # full-sublane vregs for all (B, *) tiles
    Vp = _round_up(V, 128)      # lane-dense (unmasked) output stores
    Tm1 = Tmax - 1

    # ---- glue: pooling, embedding gather, layout plumbing, padding, schedule ----
    # AvgPool2d(wh, stride=1) over the full wh x wh map == mean over spatial.
    pooled = jnp.mean(x.reshape(B, C, hh * ww), axis=-1)                    # (B, C)
    pooled = jnp.pad(pooled, ((0, Bp - B), (0, 0)))                         # (Bp, C)

    cap_emb = params["emb"][caption][:, :Tm1, :]                            # (B, Tm1, F)
    cap_tm = jnp.transpose(cap_emb, (1, 0, 2))                              # (Tm1, B, F)
    cap_tm = jnp.pad(cap_tm, ((0, 0), (0, Bp - B), (0, 0)))                 # (Tm1, Bp, F)
    cap_flat = cap_tm.reshape(Tm1 * Bp, F)

    # NOTE: truncated-batch semantics require captions sorted by descending length
    # (same assumption as the original PyTorch loop).
    lengths = jnp.sum(mask, axis=1).astype(jnp.int32)                       # (B,)
    bszt = jnp.sum(lengths[None, :] >
                   jnp.arange(Tmax, dtype=jnp.int32)[:, None], axis=1).astype(jnp.int32)

    # fused init weights and lane-padded classifier (zero columns are free through the MXU)
    wf2hc = jnp.concatenate([params["wf2h"], params["wf2c"]], axis=1)       # (C, 2H)
    bf2hc = jnp.concatenate([params["bf2h"], params["bf2c"]], axis=1)       # (1, 2H)
    wcls_p = jnp.pad(params["wcls"], ((0, 0), (0, Vp - V)))                 # (H, Vp)
    bcls_p = jnp.pad(params["bcls"], ((0, 0), (0, Vp - V)))                 # (1, Vp)

    grid_spec = pltpu.PrefetchScalarGridSpec(
        num_scalar_prefetch=1,
        grid=(1,),                                                          # single invocation; time loop in-kernel
        in_specs=[
            pl.BlockSpec((Bp, C), lambda i, bszt: (0, 0)),
            pl.BlockSpec((Tm1 * Bp, F), lambda i, bszt: (0, 0)),
            pl.BlockSpec((C, 2 * H), lambda i, bszt: (0, 0)),
            pl.BlockSpec((1, 2 * H), lambda i, bszt: (0, 0)),
            pl.BlockSpec((F, 4 * H), lambda i, bszt: (0, 0)),
            pl.BlockSpec((1, 4 * H), lambda i, bszt: (0, 0)),
            pl.BlockSpec((H, 4 * H), lambda i, bszt: (0, 0)),
            pl.BlockSpec((H, Vp), lambda i, bszt: (0, 0)),
            pl.BlockSpec((1, Vp), lambda i, bszt: (0, 0)),
        ],
        out_specs=pl.BlockSpec((Tmax * Bp, Vp), lambda i, bszt: (0, 0)),
        scratch_shapes=[
            pltpu.VMEM((Tm1 * Bp, 4 * H), jnp.float32),   # precomputed input gates
            pltpu.VMEM((Tm1 * Bp, H), jnp.float32),       # per-step masked h_new
            pltpu.VMEM((Tm1 * Bp, 1), jnp.float32),       # per-step activity mask
        ],
    )

    preds_flat = pl.pallas_call(
        cbam_sca_kernel,
        out_shape=jax.ShapeDtypeStruct((Tmax * Bp, Vp), jnp.float32),
        grid_spec=grid_spec,
        compiler_params=pltpu.CompilerParams(dimension_semantics=("arbitrary",)),
    )(bszt, pooled, cap_flat,
      wf2hc, bf2hc, params["wih"], params["bg"], params["whh"], wcls_p, bcls_p)

    preds = preds_flat.reshape(Tmax, Bp, Vp)[:, :B, :V]                     # strip padding
    return jnp.transpose(preds, (1, 0, 2))                                  # (B, Tmax, V)


def _sigmoid_ref(z):
    return 1.0 / (1.0 + jnp.exp(-z))


def reference_forward(x, caption, mask, params, Tmax):
    """Pure-JAX re-implementation of the PyTorch forward (eval mode)."""
    B, C = x.shape[0], x.shape[1]
    H = params["wf2h"].shape[1]
    V = params["wcls"].shape[1]
    cap_emb = params["emb"][caption]
    lengths = np.asarray(jnp.sum(mask, axis=1)).astype(np.int64)
    pooled = jnp.mean(x.reshape(B, C, -1), axis=-1)
    h = pooled @ params["wf2h"] + params["bf2h"]
    c = pooled @ params["wf2c"] + params["bf2c"]
    preds = jnp.zeros((B, Tmax, V), jnp.float32)
    for T in range(Tmax):
        bszt = int((lengths > T).sum())
        if T < Tmax - 1:
            xt = cap_emb[:bszt, T, :]
            gates = xt @ params["wih"] + h[:bszt] @ params["whh"] + params["bg"]
            i = _sigmoid_ref(gates[:, 0:H])
            f = _sigmoid_ref(gates[:, H:2 * H])
            g = jnp.tanh(gates[:, 2 * H:3 * H])
            o = _sigmoid_ref(gates[:, 3 * H:4 * H])
            c_new = f * c[:bszt] + i * g
            h_new = o * jnp.tanh(c_new)
            preds = preds.at[:bszt, T, :].set(h_new @ params["wcls"] + params["bcls"])
            h = h.at[:bszt].set(h_new)
            c = c.at[:bszt].set(c_new)
    return preds


if __name__ == "__main__":
    # module hyperparameters (small, consistent with __init__)
    feat_size, hidden_size, vocab_size = 32, 32, 48
    sptial_size, channel_size = 16, 16
    wh = int(math.sqrt(sptial_size))
    B, Tcap = 4, 8
    H = hidden_size

    key = jax.random.PRNGKey(0)
    ks = jax.random.split(key, 10)

    def xavier(k, shape):
        lim = math.sqrt(6.0 / (shape[0] + shape[1]))
        return jax.random.uniform(k, shape, jnp.float32, -lim, lim)

    # deterministic synthetic parameters (weights pre-transposed to (in, out))
    params = {
        "emb":  jax.random.uniform(ks[0], (vocab_size, feat_size), jnp.float32, -0.1, 0.1),
        "wf2h": xavier(ks[1], (channel_size, H)),
        "bf2h": jnp.zeros((1, H), jnp.float32),
        "wf2c": xavier(ks[2], (channel_size, H)),
        "bf2c": jnp.zeros((1, H), jnp.float32),
        "wih":  jax.random.uniform(ks[3], (feat_size, 4 * H), jnp.float32, -0.1, 0.1),
        "whh":  jax.random.uniform(ks[4], (H, 4 * H), jnp.float32, -0.1, 0.1),
        "bg":   jax.random.uniform(ks[5], (1, 4 * H), jnp.float32, -0.1, 0.1),
        "wcls": xavier(ks[6], (H, vocab_size)),
        "bcls": jnp.zeros((1, vocab_size), jnp.float32),
    }

    x = jax.random.normal(ks[7], (B, channel_size, wh, wh), jnp.float32)        # NCHW
    caption = jax.random.randint(ks[8], (B, Tcap), 0, vocab_size, jnp.int32)
    lengths_py = [8, 6, 5, 3]   # descending, as the torch truncated-batch loop assumes
    mask = (jnp.arange(Tcap)[None, :] <
            jnp.array(lengths_py)[:, None]).astype(jnp.float32)
    # TODO(synk): max(maxlen) is data-dependent in PyTorch; computed host-side here
    # from the concrete lengths since JAX needs a static output shape.
    Tmax = int(max(lengths_py))

    preds = cbam_sca_forward(x, caption, mask, params, Tmax)
    preds = jax.block_until_ready(preds)

    ref = reference_forward(x, caption, mask, params, Tmax)
    np.testing.assert_allclose(np.asarray(preds), np.asarray(ref), rtol=1e-2, atol=1e-2)

    print("KERNEL_OK")
</pallas_src>

<mosaic_0001>
module attributes {stable_mosaic.version = 11 : i64} {
  func.func @cbam_sca_kernel(%arg0: i32, %arg1: memref<8xi32, #tpu.memory_space<smem>>, %arg2: memref<8x16xf32, #tpu.memory_space<vmem>>, %arg3: memref<56x32xf32, #tpu.memory_space<vmem>>, %arg4: memref<16x64xf32, #tpu.memory_space<vmem>>, %arg5: memref<1x64xf32, #tpu.memory_space<vmem>>, %arg6: memref<32x128xf32, #tpu.memory_space<vmem>>, %arg7: memref<1x128xf32, #tpu.memory_space<vmem>>, %arg8: memref<32x128xf32, #tpu.memory_space<vmem>>, %arg9: memref<32x128xf32, #tpu.memory_space<vmem>>, %arg10: memref<1x128xf32, #tpu.memory_space<vmem>>, %arg11: memref<64x128xf32, #tpu.memory_space<vmem>>, %arg12: memref<56x128xf32, #tpu.memory_space<vmem>>, %arg13: memref<56x32xf32, #tpu.memory_space<vmem>>, %arg14: memref<56x1xf32, #tpu.memory_space<vmem>>) attributes {dimension_semantics = [#tpu.dimension_semantics<arbitrary>], iteration_bounds = array<i64: 1>, scalar_prefetch = 1 : i64, scratch_operands = 3 : i64, tpu.core_type = #tpu.core_type<tc>, window_params = [{pipeline_mode = #tpu.pipeline_mode<synchronous>, transform_indices = @transform_0, window_bounds = array<i64: 8, 16>}, {pipeline_mode = #tpu.pipeline_mode<synchronous>, transform_indices = @transform_1, window_bounds = array<i64: 56, 32>}, {pipeline_mode = #tpu.pipeline_mode<synchronous>, transform_indices = @transform_2, window_bounds = array<i64: 16, 64>}, {pipeline_mode = #tpu.pipeline_mode<synchronous>, transform_indices = @transform_3, window_bounds = array<i64: 1, 64>}, {pipeline_mode = #tpu.pipeline_mode<synchronous>, transform_indices = @transform_4, window_bounds = array<i64: 32, 128>}, {pipeline_mode = #tpu.pipeline_mode<synchronous>, transform_indices = @transform_5, window_bounds = array<i64: 1, 128>}, {pipeline_mode = #tpu.pipeline_mode<synchronous>, transform_indices = @transform_6, window_bounds = array<i64: 32, 128>}, {pipeline_mode = #tpu.pipeline_mode<synchronous>, transform_indices = @transform_7, window_bounds = array<i64: 32, 128>}, {pipeline_mode = #tpu.pipeline_mode<synchronous>, transform_indices = @transform_8, window_bounds = array<i64: 1, 128>}, {pipeline_mode = #tpu.pipeline_mode<synchronous>, transform_indices = @transform_9, window_bounds = array<i64: 64, 128>}]} {
    %c0 = arith.constant 0 : index
    %c0_0 = arith.constant 0 : index
    %0 = vector.load %arg2[%c0, %c0_0] : memref<8x16xf32, #tpu.memory_space<vmem>>, vector<8x16xf32>
    %c0_1 = arith.constant 0 : index
    %c0_2 = arith.constant 0 : index
    %1 = vector.load %arg4[%c0_1, %c0_2] : memref<16x64xf32, #tpu.memory_space<vmem>>, vector<16x64xf32>
    %cst = arith.constant dense<0.000000e+00> : vector<8x64xf32>
    %2 = tpu.matmul %0, %1, %cst {dimension_numbers = #tpu.dot_dimension_numbers<[1], [0], [0], [1], [0, 0, 1, 1], [], []>} : vector<8x16xf32>, vector<16x64xf32>, vector<8x64xf32> -> vector<8x64xf32>
    %c0_3 = arith.constant 0 : index
    %c0_4 = arith.constant 0 : index
    %3 = vector.load %arg5[%c0_3, %c0_4] : memref<1x64xf32, #tpu.memory_space<vmem>>, vector<1x64xf32>
    %4 = vector.broadcast %3 : vector<1x64xf32> to vector<8x64xf32>
    %5 = arith.addf %2, %4 : vector<8x64xf32>
    %6 = vector.extract_strided_slice %5 {offsets = [0, 0], sizes = [8, 32], strides = [1, 1]} : vector<8x64xf32> to vector<8x32xf32>
    %7 = vector.extract_strided_slice %5 {offsets = [0, 32], sizes = [8, 32], strides = [1, 1]} : vector<8x64xf32> to vector<8x32xf32>
    %c0_5 = arith.constant 0 : index
    %c0_6 = arith.constant 0 : index
    %8 = vector.load %arg3[%c0_5, %c0_6] : memref<56x32xf32, #tpu.memory_space<vmem>>, vector<56x32xf32>
    %c0_7 = arith.constant 0 : index
    %c0_8 = arith.constant 0 : index
    %9 = vector.load %arg6[%c0_7, %c0_8] : memref<32x128xf32, #tpu.memory_space<vmem>>, vector<32x128xf32>
    %cst_9 = arith.constant dense<0.000000e+00> : vector<56x128xf32>
    %10 = tpu.matmul %8, %9, %cst_9 {dimension_numbers = #tpu.dot_dimension_numbers<[1], [0], [0], [1], [0, 0, 1, 1], [], []>} : vector<56x32xf32>, vector<32x128xf32>, vector<56x128xf32> -> vector<56x128xf32>
    %c0_10 = arith.constant 0 : index
    %c0_11 = arith.constant 0 : index
    %11 = vector.load %arg7[%c0_10, %c0_11] : memref<1x128xf32, #tpu.memory_space<vmem>>, vector<1x128xf32>
    %12 = vector.broadcast %11 : vector<1x128xf32> to vector<56x128xf32>
    %13 = arith.addf %10, %12 : vector<56x128xf32>
    %c0_12 = arith.constant 0 : index
    %c0_13 = arith.constant 0 : index
    %14 = vector.load %arg12[%c0_12, %c0_13] : memref<56x128xf32, #tpu.memory_space<vmem>>, vector<56x128xf32>
    tpu.vector_store %arg12[%c0_12, %c0_13], %13 {strides = array<i32>} : memref<56x128xf32, #tpu.memory_space<vmem>>, vector<56x128xf32>,
    %c0_14 = arith.constant 0 : index
    %c0_15 = arith.constant 0 : index
    %15 = vector.load %arg8[%c0_14, %c0_15] : memref<32x128xf32, #tpu.memory_space<vmem>>, vector<32x128xf32>
    %16 = tpu.iota {dimensions = array<i32: 0>} : vector<8x1xi32>
    %c0_i32 = arith.constant 0 : i32
    %17 = arith.index_cast %c0_i32 : i32 to index
    %18 = memref.load %arg1[%17] : memref<8xi32, #tpu.memory_space<smem>>
    %19 = vector.broadcast %18 : i32 to vector<8x1xi32>
    %20 = arith.cmpi slt, %16, %19 : vector<8x1xi32>
    %c8_i32 = arith.constant 8 : i32
    %21 = arith.muli %c0_i32, %c8_i32 : i32
    %22 = tpu.assume_multiple %21, 8 : i32
    %23 = arith.index_cast %22 : i32 to index
    %c0_16 = arith.constant 0 : index
    %24 = vector.load %arg12[%23, %c0_16] : memref<56x128xf32, #tpu.memory_space<vmem>>, vector<8x128xf32>
    %cst_17 = arith.constant dense<0.000000e+00> : vector<8x128xf32>
    %25 = tpu.matmul %6, %15, %cst_17 {dimension_numbers = #tpu.dot_dimension_numbers<[1], [0], [0], [1], [0, 0, 1, 1], [], []>} : vector<8x32xf32>, vector<32x128xf32>, vector<8x128xf32> -> vector<8x128xf32>
    %26 = arith.addf %24, %25 : vector<8x128xf32>
    %cst_18 = arith.constant 0.000000e+00 : f32
    %27 = vector.broadcast %cst_18 : f32 to vector<8x128xf32>
    %28 = arith.subf %27, %26 : vector<8x128xf32>
    %29 = math.exp %28 : vector<8x128xf32>
    %cst_19 = arith.constant 1.000000e+00 : f32
    %30 = vector.broadcast %cst_19 : f32 to vector<8x128xf32>
    %31 = arith.addf %30, %29 : vector<8x128xf32>
    %cst_20 = arith.constant 1.000000e+00 : f32
    %32 = vector.broadcast %cst_20 : f32 to vector<8x128xf32>
    %33 = arith.divf %32, %31 : vector<8x128xf32>
    %34 = vector.extract_strided_slice %33 {offsets = [0, 0], sizes = [8, 32], strides = [1, 1]} : vector<8x128xf32> to vector<8x32xf32>
    %35 = vector.extract_strided_slice %33 {offsets = [0, 32], sizes = [8, 32], strides = [1, 1]} : vector<8x128xf32> to vector<8x32xf32>
    %36 = vector.extract_strided_slice %33 {offsets = [0, 96], sizes = [8, 32], strides = [1, 1]} : vector<8x128xf32> to vector<8x32xf32>
    %37 = vector.extract_strided_slice %26 {offsets = [0, 64], sizes = [8, 32], strides = [1, 1]} : vector<8x128xf32> to vector<8x32xf32>
    %38 = math.tanh %37 : vector<8x32xf32>
    %39 = arith.mulf %35, %7 : vector<8x32xf32>
    %40 = arith.mulf %34, %38 : vector<8x32xf32>
    %41 = arith.addf %39, %40 : vector<8x32xf32>
    %42 = math.tanh %41 : vector<8x32xf32>
    %43 = arith.mulf %36, %42 : vector<8x32xf32>
    %cst_21 = arith.constant 0.000000e+00 : f32
    %44 = vector.shape_cast %20 : vector<8x1xi1> to vector<8x1xi1>
    %45 = vector.broadcast %44 : vector<8x1xi1> to vector<8x32xi1>
    %46 = vector.broadcast %cst_21 : f32 to vector<8x32xf32>
    %47 = arith.select %45, %43, %46 : vector<8x32xi1>, vector<8x32xf32>
    %48 = arith.index_cast %22 : i32 to index
    %c0_22 = arith.constant 0 : index
    %49 = vector.load %arg13[%48, %c0_22] : memref<56x32xf32, #tpu.memory_space<vmem>>, vector<8x32xf32>
    tpu.vector_store %arg13[%48, %c0_22], %47 {strides = array<i32>} : memref<56x32xf32, #tpu.memory_space<vmem>>, vector<8x32xf32>,
    %50 = arith.extui %20 : vector<8x1xi1> to vector<8x1xi32>
    %51 = arith.sitofp %50 : vector<8x1xi32> to vector<8x1xf32>
    %52 = arith.index_cast %22 : i32 to index
    %c0_23 = arith.constant 0 : index
    %53 = vector.load %arg14[%52, %c0_23] : memref<56x1xf32, #tpu.memory_space<vmem>>, vector<8x1xf32>
    tpu.vector_store %arg14[%52, %c0_23], %51 {strides = array<i32>} : memref<56x1xf32, #tpu.memory_space<vmem>>, vector<8x1xf32>,
    %54 = vector.shape_cast %20 : vector<8x1xi1> to vector<8x1xi1>
    %55 = vector.broadcast %54 : vector<8x1xi1> to vector<8x32xi1>
    %56 = arith.select %55, %43, %6 : vector<8x32xi1>, vector<8x32xf32>
    %57 = vector.shape_cast %20 : vector<8x1xi1> to vector<8x1xi1>
    %58 = vector.broadcast %57 : vector<8x1xi1> to vector<8x32xi1>
    %59 = arith.select %58, %41, %7 : vector<8x32xi1>, vector<8x32xf32>
    %c1_i32 = arith.constant 1 : i32
    %60 = arith.index_cast %c1_i32 : i32 to index
    %61 = memref.load %arg1[%60] : memref<8xi32, #tpu.memory_space<smem>>
    %62 = vector.broadcast %61 : i32 to vector<8x1xi32>
    %63 = arith.cmpi slt, %16, %62 : vector<8x1xi32>
    %c8_i32_24 = arith.constant 8 : i32
    %64 = arith.muli %c1_i32, %c8_i32_24 : i32
    %65 = tpu.assume_multiple %64, 8 : i32
    %66 = arith.index_cast %65 : i32 to index
    %c0_25 = arith.constant 0 : index
    %67 = vector.load %arg12[%66, %c0_25] : memref<56x128xf32, #tpu.memory_space<vmem>>, vector<8x128xf32>
    %cst_26 = arith.constant dense<0.000000e+00> : vector<8x128xf32>
    %68 = tpu.matmul %56, %15, %cst_26 {dimension_numbers = #tpu.dot_dimension_numbers<[1], [0], [0], [1], [0, 0, 1, 1], [], []>} : vector<8x32xf32>, vector<32x128xf32>, vector<8x128xf32> -> vector<8x128xf32>
    %69 = arith.addf %67, %68 : vector<8x128xf32>
    %cst_27 = arith.constant 0.000000e+00 : f32
    %70 = vector.broadcast %cst_27 : f32 to vector<8x128xf32>
    %71 = arith.subf %70, %69 : vector<8x128xf32>
    %72 = math.exp %71 : vector<8x128xf32>
    %cst_28 = arith.constant 1.000000e+00 : f32
    %73 = vector.broadcast %cst_28 : f32 to vector<8x128xf32>
    %74 = arith.addf %73, %72 : vector<8x128xf32>
    %cst_29 = arith.constant 1.000000e+00 : f32
    %75 = vector.broadcast %cst_29 : f32 to vector<8x128xf32>
    %76 = arith.divf %75, %74 : vector<8x128xf32>
    %77 = vector.extract_strided_slice %76 {offsets = [0, 0], sizes = [8, 32], strides = [1, 1]} : vector<8x128xf32> to vector<8x32xf32>
    %78 = vector.extract_strided_slice %76 {offsets = [0, 32], sizes = [8, 32], strides = [1, 1]} : vector<8x128xf32> to vector<8x32xf32>
    %79 = vector.extract_strided_slice %76 {offsets = [0, 96], sizes = [8, 32], strides = [1, 1]} : vector<8x128xf32> to vector<8x32xf32>
    %80 = vector.extract_strided_slice %69 {offsets = [0, 64], sizes = [8, 32], strides = [1, 1]} : vector<8x128xf32> to vector<8x32xf32>
    %81 = math.tanh %80 : vector<8x32xf32>
    %82 = arith.mulf %78, %59 : vector<8x32xf32>
    %83 = arith.mulf %77, %81 : vector<8x32xf32>
    %84 = arith.addf %82, %83 : vector<8x32xf32>
    %85 = math.tanh %84 : vector<8x32xf32>
    %86 = arith.mulf %79, %85 : vector<8x32xf32>
    %cst_30 = arith.constant 0.000000e+00 : f32
    %87 = vector.shape_cast %63 : vector<8x1xi1> to vector<8x1xi1>
    %88 = vector.broadcast %87 : vector<8x1xi1> to vector<8x32xi1>
    %89 = vector.broadcast %cst_30 : f32 to vector<8x32xf32>
    %90 = arith.select %88, %86, %89 : vector<8x32xi1>, vector<8x32xf32>
    %91 = arith.index_cast %65 : i32 to index
    %c0_31 = arith.constant 0 : index
    %92 = vector.load %arg13[%91, %c0_31] : memref<56x32xf32, #tpu.memory_space<vmem>>, vector<8x32xf32>
    tpu.vector_store %arg13[%91, %c0_31], %90 {strides = array<i32>} : memref<56x32xf32, #tpu.memory_space<vmem>>, vector<8x32xf32>,
    %93 = arith.extui %63 : vector<8x1xi1> to vector<8x1xi32>
    %94 = arith.sitofp %93 : vector<8x1xi32> to vector<8x1xf32>
    %95 = arith.index_cast %65 : i32 to index
    %c0_32 = arith.constant 0 : index
    %96 = vector.load %arg14[%95, %c0_32] : memref<56x1xf32, #tpu.memory_space<vmem>>, vector<8x1xf32>
    tpu.vector_store %arg14[%95, %c0_32], %94 {strides = array<i32>} : memref<56x1xf32, #tpu.memory_space<vmem>>, vector<8x1xf32>,
    %97 = vector.shape_cast %63 : vector<8x1xi1> to vector<8x1xi1>
    %98 = vector.broadcast %97 : vector<8x1xi1> to vector<8x32xi1>
    %99 = arith.select %98, %86, %56 : vector<8x32xi1>, vector<8x32xf32>
    %100 = vector.shape_cast %63 : vector<8x1xi1> to vector<8x1xi1>
    %101 = vector.broadcast %100 : vector<8x1xi1> to vector<8x32xi1>
    %102 = arith.select %101, %84, %59 : vector<8x32xi1>, vector<8x32xf32>
    %c2_i32 = arith.constant 2 : i32
    %103 = arith.index_cast %c2_i32 : i32 to index
    %104 = memref.load %arg1[%103] : memref<8xi32, #tpu.memory_space<smem>>
    %105 = vector.broadcast %104 : i32 to vector<8x1xi32>
    %106 = arith.cmpi slt, %16, %105 : vector<8x1xi32>
    %c8_i32_33 = arith.constant 8 : i32
    %107 = arith.muli %c2_i32, %c8_i32_33 : i32
    %108 = tpu.assume_multiple %107, 8 : i32
    %109 = arith.index_cast %108 : i32 to index
    %c0_34 = arith.constant 0 : index
    %110 = vector.load %arg12[%109, %c0_34] : memref<56x128xf32, #tpu.memory_space<vmem>>, vector<8x128xf32>
    %cst_35 = arith.constant dense<0.000000e+00> : vector<8x128xf32>
    %111 = tpu.matmul %99, %15, %cst_35 {dimension_numbers = #tpu.dot_dimension_numbers<[1], [0], [0], [1], [0, 0, 1, 1], [], []>} : vector<8x32xf32>, vector<32x128xf32>, vector<8x128xf32> -> vector<8x128xf32>
    %112 = arith.addf %110, %111 : vector<8x128xf32>
    %cst_36 = arith.constant 0.000000e+00 : f32
    %113 = vector.broadcast %cst_36 : f32 to vector<8x128xf32>
    %114 = arith.subf %113, %112 : vector<8x128xf32>
    %115 = math.exp %114 : vector<8x128xf32>
    %cst_37 = arith.constant 1.000000e+00 : f32
    %116 = vector.broadcast %cst_37 : f32 to vector<8x128xf32>
    %117 = arith.addf %116, %115 : vector<8x128xf32>
    %cst_38 = arith.constant 1.000000e+00 : f32
    %118 = vector.broadcast %cst_38 : f32 to vector<8x128xf32>
    %119 = arith.divf %118, %117 : vector<8x128xf32>
    %120 = vector.extract_strided_slice %119 {offsets = [0, 0], sizes = [8, 32], strides = [1, 1]} : vector<8x128xf32> to vector<8x32xf32>
    %121 = vector.extract_strided_slice %119 {offsets = [0, 32], sizes = [8, 32], strides = [1, 1]} : vector<8x128xf32> to vector<8x32xf32>
    %122 = vector.extract_strided_slice %119 {offsets = [0, 96], sizes = [8, 32], strides = [1, 1]} : vector<8x128xf32> to vector<8x32xf32>
    %123 = vector.extract_strided_slice %112 {offsets = [0, 64], sizes = [8, 32], strides = [1, 1]} : vector<8x128xf32> to vector<8x32xf32>
    %124 = math.tanh %123 : vector<8x32xf32>
    %125 = arith.mulf %121, %102 : vector<8x32xf32>
    %126 = arith.mulf %120, %124 : vector<8x32xf32>
    %127 = arith.addf %125, %126 : vector<8x32xf32>
    %128 = math.tanh %127 : vector<8x32xf32>
    %129 = arith.mulf %122, %128 : vector<8x32xf32>
    %cst_39 = arith.constant 0.000000e+00 : f32
    %130 = vector.shape_cast %106 : vector<8x1xi1> to vector<8x1xi1>
    %131 = vector.broadcast %130 : vector<8x1xi1> to vector<8x32xi1>
    %132 = vector.broadcast %cst_39 : f32 to vector<8x32xf32>
    %133 = arith.select %131, %129, %132 : vector<8x32xi1>, vector<8x32xf32>
    %134 = arith.index_cast %108 : i32 to index
    %c0_40 = arith.constant 0 : index
    %135 = vector.load %arg13[%134, %c0_40] : memref<56x32xf32, #tpu.memory_space<vmem>>, vector<8x32xf32>
    tpu.vector_store %arg13[%134, %c0_40], %133 {strides = array<i32>} : memref<56x32xf32, #tpu.memory_space<vmem>>, vector<8x32xf32>,
    %136 = arith.extui %106 : vector<8x1xi1> to vector<8x1xi32>
    %137 = arith.sitofp %136 : vector<8x1xi32> to vector<8x1xf32>
    %138 = arith.index_cast %108 : i32 to index
    %c0_41 = arith.constant 0 : index
    %139 = vector.load %arg14[%138, %c0_41] : memref<56x1xf32, #tpu.memory_space<vmem>>, vector<8x1xf32>
    tpu.vector_store %arg14[%138, %c0_41], %137 {strides = array<i32>} : memref<56x1xf32, #tpu.memory_space<vmem>>, vector<8x1xf32>,
    %140 = vector.shape_cast %106 : vector<8x1xi1> to vector<8x1xi1>
    %141 = vector.broadcast %140 : vector<8x1xi1> to vector<8x32xi1>
    %142 = arith.select %141, %129, %99 : vector<8x32xi1>, vector<8x32xf32>
    %143 = vector.shape_cast %106 : vector<8x1xi1> to vector<8x1xi1>
    %144 = vector.broadcast %143 : vector<8x1xi1> to vector<8x32xi1>
    %145 = arith.select %144, %127, %102 : vector<8x32xi1>, vector<8x32xf32>
    %c3_i32 = arith.constant 3 : i32
    %146 = arith.index_cast %c3_i32 : i32 to index
    %147 = memref.load %arg1[%146] : memref<8xi32, #tpu.memory_space<smem>>
    %148 = vector.broadcast %147 : i32 to vector<8x1xi32>
    %149 = arith.cmpi slt, %16, %148 : vector<8x1xi32>
    %c8_i32_42 = arith.constant 8 : i32
    %150 = arith.muli %c3_i32, %c8_i32_42 : i32
    %151 = tpu.assume_multiple %150, 8 : i32
    %152 = arith.index_cast %151 : i32 to index
    %c0_43 = arith.constant 0 : index
    %153 = vector.load %arg12[%152, %c0_43] : memref<56x128xf32, #tpu.memory_space<vmem>>, vector<8x128xf32>
    %cst_44 = arith.constant dense<0.000000e+00> : vector<8x128xf32>
    %154 = tpu.matmul %142, %15, %cst_44 {dimension_numbers = #tpu.dot_dimension_numbers<[1], [0], [0], [1], [0, 0, 1, 1], [], []>} : vector<8x32xf32>, vector<32x128xf32>, vector<8x128xf32> -> vector<8x128xf32>
    %155 = arith.addf %153, %154 : vector<8x128xf32>
    %cst_45 = arith.constant 0.000000e+00 : f32
    %156 = vector.broadcast %cst_45 : f32 to vector<8x128xf32>
    %157 = arith.subf %156, %155 : vector<8x128xf32>
    %158 = math.exp %157 : vector<8x128xf32>
    %cst_46 = arith.constant 1.000000e+00 : f32
    %159 = vector.broadcast %cst_46 : f32 to vector<8x128xf32>
    %160 = arith.addf %159, %158 : vector<8x128xf32>
    %cst_47 = arith.constant 1.000000e+00 : f32
    %161 = vector.broadcast %cst_47 : f32 to vector<8x128xf32>
    %162 = arith.divf %161, %160 : vector<8x128xf32>
    %163 = vector.extract_strided_slice %162 {offsets = [0, 0], sizes = [8, 32], strides = [1, 1]} : vector<8x128xf32> to vector<8x32xf32>
    %164 = vector.extract_strided_slice %162 {offsets = [0, 32], sizes = [8, 32], strides = [1, 1]} : vector<8x128xf32> to vector<8x32xf32>
    %165 = vector.extract_strided_slice %162 {offsets = [0, 96], sizes = [8, 32], strides = [1, 1]} : vector<8x128xf32> to vector<8x32xf32>
    %166 = vector.extract_strided_slice %155 {offsets = [0, 64], sizes = [8, 32], strides = [1, 1]} : vector<8x128xf32> to vector<8x32xf32>
    %167 = math.tanh %166 : vector<8x32xf32>
    %168 = arith.mulf %164, %145 : vector<8x32xf32>
    %169 = arith.mulf %163, %167 : vector<8x32xf32>
    %170 = arith.addf %168, %169 : vector<8x32xf32>
    %171 = math.tanh %170 : vector<8x32xf32>
    %172 = arith.mulf %165, %171 : vector<8x32xf32>
    %cst_48 = arith.constant 0.000000e+00 : f32
    %173 = vector.shape_cast %149 : vector<8x1xi1> to vector<8x1xi1>
    %174 = vector.broadcast %173 : vector<8x1xi1> to vector<8x32xi1>
    %175 = vector.broadcast %cst_48 : f32 to vector<8x32xf32>
    %176 = arith.select %174, %172, %175 : vector<8x32xi1>, vector<8x32xf32>
    %177 = arith.index_cast %151 : i32 to index
    %c0_49 = arith.constant 0 : index
    %178 = vector.load %arg13[%177, %c0_49] : memref<56x32xf32, #tpu.memory_space<vmem>>, vector<8x32xf32>
    tpu.vector_store %arg13[%177, %c0_49], %176 {strides = array<i32>} : memref<56x32xf32, #tpu.memory_space<vmem>>, vector<8x32xf32>,
    %179 = arith.extui %149 : vector<8x1xi1> to vector<8x1xi32>
    %180 = arith.sitofp %179 : vector<8x1xi32> to vector<8x1xf32>
    %181 = arith.index_cast %151 : i32 to index
    %c0_50 = arith.constant 0 : index
    %182 = vector.load %arg14[%181, %c0_50] : memref<56x1xf32, #tpu.memory_space<vmem>>, vector<8x1xf32>
    tpu.vector_store %arg14[%181, %c0_50], %180 {strides = array<i32>} : memref<56x1xf32, #tpu.memory_space<vmem>>, vector<8x1xf32>,
    %183 = vector.shape_cast %149 : vector<8x1xi1> to vector<8x1xi1>
    %184 = vector.broadcast %183 : vector<8x1xi1> to vector<8x32xi1>
    %185 = arith.select %184, %172, %142 : vector<8x32xi1>, vector<8x32xf32>
    %186 = vector.shape_cast %149 : vector<8x1xi1> to vector<8x1xi1>
    %187 = vector.broadcast %186 : vector<8x1xi1> to vector<8x32xi1>
    %188 = arith.select %187, %170, %145 : vector<8x32xi1>, vector<8x32xf32>
    %c4_i32 = arith.constant 4 : i32
    %189 = arith.index_cast %c4_i32 : i32 to index
    %190 = memref.load %arg1[%189] : memref<8xi32, #tpu.memory_space<smem>>
    %191 = vector.broadcast %190 : i32 to vector<8x1xi32>
    %192 = arith.cmpi slt, %16, %191 : vector<8x1xi32>
    %c8_i32_51 = arith.constant 8 : i32
    %193 = arith.muli %c4_i32, %c8_i32_51 : i32
    %194 = tpu.assume_multiple %193, 8 : i32
    %195 = arith.index_cast %194 : i32 to index
    %c0_52 = arith.constant 0 : index
    %196 = vector.load %arg12[%195, %c0_52] : memref<56x128xf32, #tpu.memory_space<vmem>>, vector<8x128xf32>
    %cst_53 = arith.constant dense<0.000000e+00> : vector<8x128xf32>
    %197 = tpu.matmul %185, %15, %cst_53 {dimension_numbers = #tpu.dot_dimension_numbers<[1], [0], [0], [1], [0, 0, 1, 1], [], []>} : vector<8x32xf32>, vector<32x128xf32>, vector<8x128xf32> -> vector<8x128xf32>
    %198 = arith.addf %196, %197 : vector<8x128xf32>
    %cst_54 = arith.constant 0.000000e+00 : f32
    %199 = vector.broadcast %cst_54 : f32 to vector<8x128xf32>
    %200 = arith.subf %199, %198 : vector<8x128xf32>
    %201 = math.exp %200 : vector<8x128xf32>
    %cst_55 = arith.constant 1.000000e+00 : f32
    %202 = vector.broadcast %cst_55 : f32 to vector<8x128xf32>
    %203 = arith.addf %202, %201 : vector<8x128xf32>
    %cst_56 = arith.constant 1.000000e+00 : f32
    %204 = vector.broadcast %cst_56 : f32 to vector<8x128xf32>
    %205 = arith.divf %204, %203 : vector<8x128xf32>
    %206 = vector.extract_strided_slice %205 {offsets = [0, 0], sizes = [8, 32], strides = [1, 1]} : vector<8x128xf32> to vector<8x32xf32>
    %207 = vector.extract_strided_slice %205 {offsets = [0, 32], sizes = [8, 32], strides = [1, 1]} : vector<8x128xf32> to vector<8x32xf32>
    %208 = vector.extract_strided_slice %205 {offsets = [0, 96], sizes = [8, 32], strides = [1, 1]} : vector<8x128xf32> to vector<8x32xf32>
    %209 = vector.extract_strided_slice %198 {offsets = [0, 64], sizes = [8, 32], strides = [1, 1]} : vector<8x128xf32> to vector<8x32xf32>
    %210 = math.tanh %209 : vector<8x32xf32>
    %211 = arith.mulf %207, %188 : vector<8x32xf32>
    %212 = arith.mulf %206, %210 : vector<8x32xf32>
    %213 = arith.addf %211, %212 : vector<8x32xf32>
    %214 = math.tanh %213 : vector<8x32xf32>
    %215 = arith.mulf %208, %214 : vector<8x32xf32>
    %cst_57 = arith.constant 0.000000e+00 : f32
    %216 = vector.shape_cast %192 : vector<8x1xi1> to vector<8x1xi1>
    %217 = vector.broadcast %216 : vector<8x1xi1> to vector<8x32xi1>
    %218 = vector.broadcast %cst_57 : f32 to vector<8x32xf32>
    %219 = arith.select %217, %215, %218 : vector<8x32xi1>, vector<8x32xf32>
    %220 = arith.index_cast %194 : i32 to index
    %c0_58 = arith.constant 0 : index
    %221 = vector.load %arg13[%220, %c0_58] : memref<56x32xf32, #tpu.memory_space<vmem>>, vector<8x32xf32>
    tpu.vector_store %arg13[%220, %c0_58], %219 {strides = array<i32>} : memref<56x32xf32, #tpu.memory_space<vmem>>, vector<8x32xf32>,
    %222 = arith.extui %192 : vector<8x1xi1> to vector<8x1xi32>
    %223 = arith.sitofp %222 : vector<8x1xi32> to vector<8x1xf32>
    %224 = arith.index_cast %194 : i32 to index
    %c0_59 = arith.constant 0 : index
    %225 = vector.load %arg14[%224, %c0_59] : memref<56x1xf32, #tpu.memory_space<vmem>>, vector<8x1xf32>
    tpu.vector_store %arg14[%224, %c0_59], %223 {strides = array<i32>} : memref<56x1xf32, #tpu.memory_space<vmem>>, vector<8x1xf32>,
    %226 = vector.shape_cast %192 : vector<8x1xi1> to vector<8x1xi1>
    %227 = vector.broadcast %226 : vector<8x1xi1> to vector<8x32xi1>
    %228 = arith.select %227, %215, %185 : vector<8x32xi1>, vector<8x32xf32>
    %229 = vector.shape_cast %192 : vector<8x1xi1> to vector<8x1xi1>
    %230 = vector.broadcast %229 : vector<8x1xi1> to vector<8x32xi1>
    %231 = arith.select %230, %213, %188 : vector<8x32xi1>, vector<8x32xf32>
    %c5_i32 = arith.constant 5 : i32
    %232 = arith.index_cast %c5_i32 : i32 to index
    %233 = memref.load %arg1[%232] : memref<8xi32, #tpu.memory_space<smem>>
    %234 = vector.broadcast %233 : i32 to vector<8x1xi32>
    %235 = arith.cmpi slt, %16, %234 : vector<8x1xi32>
    %c8_i32_60 = arith.constant 8 : i32
    %236 = arith.muli %c5_i32, %c8_i32_60 : i32
    %237 = tpu.assume_multiple %236, 8 : i32
    %238 = arith.index_cast %237 : i32 to index
    %c0_61 = arith.constant 0 : index
    %239 = vector.load %arg12[%238, %c0_61] : memref<56x128xf32, #tpu.memory_space<vmem>>, vector<8x128xf32>
    %cst_62 = arith.constant dense<0.000000e+00> : vector<8x128xf32>
    %240 = tpu.matmul %228, %15, %cst_62 {dimension_numbers = #tpu.dot_dimension_numbers<[1], [0], [0], [1], [0, 0, 1, 1], [], []>} : vector<8x32xf32>, vector<32x128xf32>, vector<8x128xf32> -> vector<8x128xf32>
    %241 = arith.addf %239, %240 : vector<8x128xf32>
    %cst_63 = arith.constant 0.000000e+00 : f32
    %242 = vector.broadcast %cst_63 : f32 to vector<8x128xf32>
    %243 = arith.subf %242, %241 : vector<8x128xf32>
    %244 = math.exp %243 : vector<8x128xf32>
    %cst_64 = arith.constant 1.000000e+00 : f32
    %245 = vector.broadcast %cst_64 : f32 to vector<8x128xf32>
    %246 = arith.addf %245, %244 : vector<8x128xf32>
    %cst_65 = arith.constant 1.000000e+00 : f32
    %247 = vector.broadcast %cst_65 : f32 to vector<8x128xf32>
    %248 = arith.divf %247, %246 : vector<8x128xf32>
    %249 = vector.extract_strided_slice %248 {offsets = [0, 0], sizes = [8, 32], strides = [1, 1]} : vector<8x128xf32> to vector<8x32xf32>
    %250 = vector.extract_strided_slice %248 {offsets = [0, 32], sizes = [8, 32], strides = [1, 1]} : vector<8x128xf32> to vector<8x32xf32>
    %251 = vector.extract_strided_slice %248 {offsets = [0, 96], sizes = [8, 32], strides = [1, 1]} : vector<8x128xf32> to vector<8x32xf32>
    %252 = vector.extract_strided_slice %241 {offsets = [0, 64], sizes = [8, 32], strides = [1, 1]} : vector<8x128xf32> to vector<8x32xf32>
    %253 = math.tanh %252 : vector<8x32xf32>
    %254 = arith.mulf %250, %231 : vector<8x32xf32>
    %255 = arith.mulf %249, %253 : vector<8x32xf32>
    %256 = arith.addf %254, %255 : vector<8x32xf32>
    %257 = math.tanh %256 : vector<8x32xf32>
    %258 = arith.mulf %251, %257 : vector<8x32xf32>
    %cst_66 = arith.constant 0.000000e+00 : f32
    %259 = vector.shape_cast %235 : vector<8x1xi1> to vector<8x1xi1>
    %260 = vector.broadcast %259 : vector<8x1xi1> to vector<8x32xi1>
    %261 = vector.broadcast %cst_66 : f32 to vector<8x32xf32>
    %262 = arith.select %260, %258, %261 : vector<8x32xi1>, vector<8x32xf32>
    %263 = arith.index_cast %237 : i32 to index
    %c0_67 = arith.constant 0 : index
    %264 = vector.load %arg13[%263, %c0_67] : memref<56x32xf32, #tpu.memory_space<vmem>>, vector<8x32xf32>
    tpu.vector_store %arg13[%263, %c0_67], %262 {strides = array<i32>} : memref<56x32xf32, #tpu.memory_space<vmem>>, vector<8x32xf32>,
    %265 = arith.extui %235 : vector<8x1xi1> to vector<8x1xi32>
    %266 = arith.sitofp %265 : vector<8x1xi32> to vector<8x1xf32>
    %267 = arith.index_cast %237 : i32 to index
    %c0_68 = arith.constant 0 : index
    %268 = vector.load %arg14[%267, %c0_68] : memref<56x1xf32, #tpu.memory_space<vmem>>, vector<8x1xf32>
    tpu.vector_store %arg14[%267, %c0_68], %266 {strides = array<i32>} : memref<56x1xf32, #tpu.memory_space<vmem>>, vector<8x1xf32>,
    %269 = vector.shape_cast %235 : vector<8x1xi1> to vector<8x1xi1>
    %270 = vector.broadcast %269 : vector<8x1xi1> to vector<8x32xi1>
    %271 = arith.select %270, %258, %228 : vector<8x32xi1>, vector<8x32xf32>
    %272 = vector.shape_cast %235 : vector<8x1xi1> to vector<8x1xi1>
    %273 = vector.broadcast %272 : vector<8x1xi1> to vector<8x32xi1>
    %274 = arith.select %273, %256, %231 : vector<8x32xi1>, vector<8x32xf32>
    %c6_i32 = arith.constant 6 : i32
    %275 = arith.index_cast %c6_i32 : i32 to index
    %276 = memref.load %arg1[%275] : memref<8xi32, #tpu.memory_space<smem>>
    %277 = vector.broadcast %276 : i32 to vector<8x1xi32>
    %278 = arith.cmpi slt, %16, %277 : vector<8x1xi32>
    %c8_i32_69 = arith.constant 8 : i32
    %279 = arith.muli %c6_i32, %c8_i32_69 : i32
    %280 = tpu.assume_multiple %279, 8 : i32
    %281 = arith.index_cast %280 : i32 to index
    %c0_70 = arith.constant 0 : index
    %282 = vector.load %arg12[%281, %c0_70] : memref<56x128xf32, #tpu.memory_space<vmem>>, vector<8x128xf32>
    %cst_71 = arith.constant dense<0.000000e+00> : vector<8x128xf32>
    %283 = tpu.matmul %271, %15, %cst_71 {dimension_numbers = #tpu.dot_dimension_numbers<[1], [0], [0], [1], [0, 0, 1, 1], [], []>} : vector<8x32xf32>, vector<32x128xf32>, vector<8x128xf32> -> vector<8x128xf32>
    %284 = arith.addf %282, %283 : vector<8x128xf32>
    %cst_72 = arith.constant 0.000000e+00 : f32
    %285 = vector.broadcast %cst_72 : f32 to vector<8x128xf32>
    %286 = arith.subf %285, %284 : vector<8x128xf32>
    %287 = math.exp %286 : vector<8x128xf32>
    %cst_73 = arith.constant 1.000000e+00 : f32
    %288 = vector.broadcast %cst_73 : f32 to vector<8x128xf32>
    %289 = arith.addf %288, %287 : vector<8x128xf32>
    %cst_74 = arith.constant 1.000000e+00 : f32
    %290 = vector.broadcast %cst_74 : f32 to vector<8x128xf32>
    %291 = arith.divf %290, %289 : vector<8x128xf32>
    %292 = vector.extract_strided_slice %291 {offsets = [0, 0], sizes = [8, 32], strides = [1, 1]} : vector<8x128xf32> to vector<8x32xf32>
    %293 = vector.extract_strided_slice %291 {offsets = [0, 32], sizes = [8, 32], strides = [1, 1]} : vector<8x128xf32> to vector<8x32xf32>
    %294 = vector.extract_strided_slice %291 {offsets = [0, 96], sizes = [8, 32], strides = [1, 1]} : vector<8x128xf32> to vector<8x32xf32>
    %295 = vector.extract_strided_slice %284 {offsets = [0, 64], sizes = [8, 32], strides = [1, 1]} : vector<8x128xf32> to vector<8x32xf32>
    %296 = math.tanh %295 : vector<8x32xf32>
    %297 = arith.mulf %293, %274 : vector<8x32xf32>
    %298 = arith.mulf %292, %296 : vector<8x32xf32>
    %299 = arith.addf %297, %298 : vector<8x32xf32>
    %300 = math.tanh %299 : vector<8x32xf32>
    %301 = arith.mulf %294, %300 : vector<8x32xf32>
    %cst_75 = arith.constant 0.000000e+00 : f32
    %302 = vector.shape_cast %278 : vector<8x1xi1> to vector<8x1xi1>
    %303 = vector.broadcast %302 : vector<8x1xi1> to vector<8x32xi1>
    %304 = vector.broadcast %cst_75 : f32 to vector<8x32xf32>
    %305 = arith.select %303, %301, %304 : vector<8x32xi1>, vector<8x32xf32>
    %306 = arith.index_cast %280 : i32 to index
    %c0_76 = arith.constant 0 : index
    %307 = vector.load %arg13[%306, %c0_76] : memref<56x32xf32, #tpu.memory_space<vmem>>, vector<8x32xf32>
    tpu.vector_store %arg13[%306, %c0_76], %305 {strides = array<i32>} : memref<56x32xf32, #tpu.memory_space<vmem>>, vector<8x32xf32>,
    %308 = arith.extui %278 : vector<8x1xi1> to vector<8x1xi32>
    %309 = arith.sitofp %308 : vector<8x1xi32> to vector<8x1xf32>
    %310 = arith.index_cast %280 : i32 to index
    %c0_77 = arith.constant 0 : index
    %311 = vector.load %arg14[%310, %c0_77] : memref<56x1xf32, #tpu.memory_space<vmem>>, vector<8x1xf32>
    tpu.vector_store %arg14[%310, %c0_77], %309 {strides = array<i32>} : memref<56x1xf32, #tpu.memory_space<vmem>>, vector<8x1xf32>,
    %312 = vector.shape_cast %278 : vector<8x1xi1> to vector<8x1xi1>
    %313 = vector.broadcast %312 : vector<8x1xi1> to vector<8x32xi1>
    %314 = arith.select %313, %301, %271 : vector<8x32xi1>, vector<8x32xf32>
    %315 = vector.shape_cast %278 : vector<8x1xi1> to vector<8x1xi1>
    %316 = vector.broadcast %315 : vector<8x1xi1> to vector<8x32xi1>
    %317 = arith.select %316, %299, %274 : vector<8x32xi1>, vector<8x32xf32>
    %c7_i32 = arith.constant 7 : i32
    %c0_78 = arith.constant 0 : index
    %c0_79 = arith.constant 0 : index
    %318 = vector.load %arg13[%c0_78, %c0_79] : memref<56x32xf32, #tpu.memory_space<vmem>>, vector<56x32xf32>
    %c0_80 = arith.constant 0 : index
    %c0_81 = arith.constant 0 : index
    %319 = vector.load %arg9[%c0_80, %c0_81] : memref<32x128xf32, #tpu.memory_space<vmem>>, vector<32x128xf32>
    %cst_82 = arith.constant dense<0.000000e+00> : vector<56x128xf32>
    %320 = tpu.matmul %318, %319, %cst_82 {dimension_numbers = #tpu.dot_dimension_numbers<[1], [0], [0], [1], [0, 0, 1, 1], [], []>} : vector<56x32xf32>, vector<32x128xf32>, vector<56x128xf32> -> vector<56x128xf32>
    %c0_83 = arith.constant 0 : index
    %c0_84 = arith.constant 0 : index
    %321 = vector.load %arg14[%c0_83, %c0_84] : memref<56x1xf32, #tpu.memory_space<vmem>>, vector<56x1xf32>
    %c0_85 = arith.constant 0 : index
    %c0_86 = arith.constant 0 : index
    %322 = vector.load %arg10[%c0_85, %c0_86] : memref<1x128xf32, #tpu.memory_space<vmem>>, vector<1x128xf32>
    %323 = vector.broadcast %321 : vector<56x1xf32> to vector<56x128xf32>
    %324 = vector.broadcast %322 : vector<1x128xf32> to vector<56x128xf32>
    %325 = arith.mulf %323, %324 : vector<56x128xf32>
    %326 = arith.addf %320, %325 : vector<56x128xf32>
    %c0_87 = arith.constant 0 : index
    %c0_88 = arith.constant 0 : index
    %327 = vector.load %arg11[%c0_87, %c0_88] : memref<64x128xf32, #tpu.memory_space<vmem>>, vector<56x128xf32>
    tpu.vector_store %arg11[%c0_87, %c0_88], %326 {strides = array<i32>} : memref<64x128xf32, #tpu.memory_space<vmem>>, vector<56x128xf32>,
    %cst_89 = arith.constant 0.000000e+00 : f32
    %328 = vector.broadcast %cst_89 : f32 to vector<8x128xf32>
    %c56 = arith.constant 56 : index
    %c0_90 = arith.constant 0 : index
    %329 = vector.load %arg11[%c56, %c0_90] : memref<64x128xf32, #tpu.memory_space<vmem>>, vector<8x128xf32>
    tpu.vector_store %arg11[%c56, %c0_90], %328 {strides = array<i32>} : memref<64x128xf32, #tpu.memory_space<vmem>>, vector<8x128xf32>,
    return
  }
  func.func @transform_0(%arg0: i32, %arg1: memref<8xi32, #tpu.memory_space<smem>>) -> (i32, i32) {
    %c0_i32 = arith.constant 0 : i32
    %c0_i32_0 = arith.constant 0 : i32
    %c0_i32_1 = arith.constant 0 : i32
    return %c0_i32, %c0_i32_0 : i32, i32
  }
  func.func @transform_1(%arg0: i32, %arg1: memref<8xi32, #tpu.memory_space<smem>>) -> (i32, i32) {
    %c0_i32 = arith.constant 0 : i32
    %c0_i32_0 = arith.constant 0 : i32
    %c0_i32_1 = arith.constant 0 : i32
    return %c0_i32, %c0_i32_0 : i32, i32
  }
  func.func @transform_2(%arg0: i32, %arg1: memref<8xi32, #tpu.memory_space<smem>>) -> (i32, i32) {
    %c0_i32 = arith.constant 0 : i32
    %c0_i32_0 = arith.constant 0 : i32
    %c0_i32_1 = arith.constant 0 : i32
    return %c0_i32, %c0_i32_0 : i32, i32
  }
  func.func @transform_3(%arg0: i32, %arg1: memref<8xi32, #tpu.memory_space<smem>>) -> (i32, i32) {
    %c0_i32 = arith.constant 0 : i32
    %c0_i32_0 = arith.constant 0 : i32
    %c0_i32_1 = arith.constant 0 : i32
    return %c0_i32, %c0_i32_0 : i32, i32
  }
  func.func @transform_4(%arg0: i32, %arg1: memref<8xi32, #tpu.memory_space<smem>>) -> (i32, i32) {
    %c0_i32 = arith.constant 0 : i32
    %c0_i32_0 = arith.constant 0 : i32
    %c0_i32_1 = arith.constant 0 : i32
    return %c0_i32, %c0_i32_0 : i32, i32
  }
  func.func @transform_5(%arg0: i32, %arg1: memref<8xi32, #tpu.memory_space<smem>>) -> (i32, i32) {
    %c0_i32 = arith.constant 0 : i32
    %c0_i32_0 = arith.constant 0 : i32
    %c0_i32_1 = arith.constant 0 : i32
    return %c0_i32, %c0_i32_0 : i32, i32
  }
  func.func @transform_6(%arg0: i32, %arg1: memref<8xi32, #tpu.memory_space<smem>>) -> (i32, i32) {
    %c0_i32 = arith.constant 0 : i32
    %c0_i32_0 = arith.constant 0 : i32
    %c0_i32_1 = arith.constant 0 : i32
    return %c0_i32, %c0_i32_0 : i32, i32
  }
  func.func @transform_7(%arg0: i32, %arg1: memref<8xi32, #tpu.memory_space<smem>>) -> (i32, i32) {
    %c0_i32 = arith.constant 0 : i32
    %c0_i32_0 = arith.constant 0 : i32
    %c0_i32_1 = arith.constant 0 : i32
    return %c0_i32, %c0_i32_0 : i32, i32
  }
  func.func @transform_8(%arg0: i32, %arg1: memref<8xi32, #tpu.memory_space<smem>>) -> (i32, i32) {
    %c0_i32 = arith.constant 0 : i32
    %c0_i32_0 = arith.constant 0 : i32
    %c0_i32_1 = arith.constant 0 : i32
    return %c0_i32, %c0_i32_0 : i32, i32
  }
  func.func @transform_9(%arg0: i32, %arg1: memref<8xi32, #tpu.memory_space<smem>>) -> (i32, i32) {
    %c0_i32 = arith.constant 0 : i32
    %c0_i32_0 = arith.constant 0 : i32
    %c0_i32_1 = arith.constant 0 : i32
    return %c0_i32, %c0_i32_0 : i32, i32
  }
}

</mosaic_0001>

<llo_original>
// kernel: tpu_custom_call.1
$region0: #{tpu_custom_call.1}
  #allocation0 [shape = 'u32[]', space=smem, size = 0x4, offset = 0x4, fixed_abs, tag = 'smem constant byte address 0x4 - core index']
  #allocation1 [shape = 'u32[72,128]{1,0:T(1,128)}', space=vmem, size = 0x9000, scoped, tag = 'internal scratch']
  #allocation2 [shape = 'f32[56,128]{1,0:T(8,128)}', space=vmem, size = 0x7000, scoped, tag = 'scratch operand']
  #allocation3 [shape = 'f32[56,32]{1,0:T(8,128)}', space=vmem, size = 0x7000, scoped, tag = 'scratch operand']
  #allocation4 [shape = 'f32[56,1]{1,0:T(8,128)}', space=vmem, size = 0x7000, scoped, tag = 'scratch operand']
  #allocation5 [shape = 's32[1]{0}', space=sflag, size = 0x4, scoped, tag = 'scoped memory for tpu_custom_call.1']
  #allocation6 [shape = 'u8[512]{0}', space=smem, size = 0x200, scoped, tag = 'prefetched SMEM operand 0']
  %s0 = inlined_call_operand.hbm [shape: s32[8], index: 0, kind: input, shape index: {}]
  %s1 = inlined_call_operand.vmem [shape: f32[8,16], index: 1, kind: input, shape index: {}]
  %s2 = inlined_call_operand.vmem [shape: f32[56,32], index: 2, kind: input, shape index: {}]
  %s3 = inlined_call_operand.vmem [shape: f32[16,64], index: 3, kind: input, shape index: {}]
  %s4 = inlined_call_operand.vmem [shape: f32[1,64], index: 4, kind: input, shape index: {}]
  %s5 = inlined_call_operand.vmem [shape: f32[32,128], index: 5, kind: input, shape index: {}]
  %s6 = inlined_call_operand.vmem [shape: f32[1,128], index: 6, kind: input, shape index: {}]
  %s7 = inlined_call_operand.vmem [shape: f32[32,128], index: 7, kind: input, shape index: {}]
  %s8 = inlined_call_operand.hbm [shape: f32[32,128], index: 8, kind: input, shape index: {}]
  %s9 = inlined_call_operand.vmem [shape: f32[1,128], index: 9, kind: input, shape index: {}]
  %s10 = inlined_call_operand.hbm [shape: f32[64,128], index: 10, kind: output, shape index: {}]
  %s11 = sld [smem:[#allocation0]]
  $region50: #{tpu_custom_call.1} parent=0
    _
  %s13 = ssub.s32 1, %s11
  %s14 = scalar_select 0, %s13, %s11
  %s16 = sshll.u32 %s0, 4
  %s17 = int_to_ptr.hbm [resolvable:$true] %s16
  %19 = dma.hbm_to_smem %s17, 16, [#allocation6], [#allocation5]
  %21 = dma.done [#allocation5], 16
  %22 = sfence
  $region1: #{tpu_custom_call.1} parent=0
    #allocation7 [shape = 'u8[16384]{0}', space=vmem, size = 0x4000, scoped, tag = 'input window, operand 8, single buffered']
    #allocation8 [shape = 's32[1]{0}', space=sflag, size = 0x4, scoped, tag = 'scoped memory for tpu_custom_call.1']
    #allocation9 [shape = 's32[1]{0}', space=sflag, size = 0x4, scoped, tag = 'scoped memory for tpu_custom_call.1']
    #allocation10 [shape = 'u8[32768]{0}', space=vmem, size = 0x8000, scoped, tag = 'output window, operand 0, single buffered']
    %23 = vsyncpa [#allocation8], 0
    %24 = vsyncpa [#allocation9], 0
    // Predicated region
    $region2: #{tpu_custom_call.1} parent=1 // pred_check
      _
    $region3: #{tpu_custom_call.1} parent=1 // pred_check_branch
      %26 = sbr.rel (0) target = $region5
    $region4: #{tpu_custom_call.1} parent=1 // pred_region
      _
    $region5: #{tpu_custom_call.1} parent=1 // pred_fallthru
      _
    // Predicated region
    $region6: #{tpu_custom_call.1} parent=1 // pred_check
      _
    $region7: #{tpu_custom_call.1} parent=1 // pred_check_branch
      %28 = sbr.rel (0) target = $region9
    $region8: #{tpu_custom_call.1} parent=1 // pred_region
      _
    $region9: #{tpu_custom_call.1} parent=1 // pred_fallthru
      _
    // Predicated region
    $region10: #{tpu_custom_call.1} parent=1 // pred_check
      _
    $region11: #{tpu_custom_call.1} parent=1 // pred_check_branch
      %30 = sbr.rel (0) target = $region13
    $region12: #{tpu_custom_call.1} parent=1 // pred_region
      _
    $region13: #{tpu_custom_call.1} parent=1 // pred_fallthru
      _
    // Predicated region
    $region14: #{tpu_custom_call.1} parent=1 // pred_check
      _
    $region15: #{tpu_custom_call.1} parent=1 // pred_check_branch
      %32 = sbr.rel (0) target = $region17
    $region16: #{tpu_custom_call.1} parent=1 // pred_region
      _
    $region17: #{tpu_custom_call.1} parent=1 // pred_fallthru
      _
    // Predicated region
    $region18: #{tpu_custom_call.1} parent=1 // pred_check
      _
    $region19: #{tpu_custom_call.1} parent=1 // pred_check_branch
      %34 = sbr.rel (0) target = $region21
    $region20: #{tpu_custom_call.1} parent=1 // pred_region
      _
    $region21: #{tpu_custom_call.1} parent=1 // pred_fallthru
      _
    // Predicated region
    $region22: #{tpu_custom_call.1} parent=1 // pred_check
      _
    $region23: #{tpu_custom_call.1} parent=1 // pred_check_branch
      %36 = sbr.rel (0) target = $region25
    $region24: #{tpu_custom_call.1} parent=1 // pred_region
      _
    $region25: #{tpu_custom_call.1} parent=1 // pred_fallthru
      _
    // Predicated region
    $region26: #{tpu_custom_call.1} parent=1 // pred_check
      _
    $region27: #{tpu_custom_call.1} parent=1 // pred_check_branch
      %38 = sbr.rel (0) target = $region29
    $region28: #{tpu_custom_call.1} parent=1 // pred_region
      _
    $region29: #{tpu_custom_call.1} parent=1 // pred_fallthru
      _
    // Predicated region
    $region30: #{tpu_custom_call.1} parent=1 // pred_check
      _
    $region31: #{tpu_custom_call.1} parent=1 // pred_check_branch
      %40 = sbr.rel (0) target = $region33
    $region32: #{tpu_custom_call.1} parent=1 // pred_region
      %42 = vsyncadd [#allocation8], 0
      %s43 = sshll.u32 %s8, 4
      %s44 = int_to_ptr.hbm [resolvable:$true] %s43
      %s45 = sshll.u32 [#allocation7], 4
      %s46 = int_to_ptr.vmem [resolvable:$true] %s45
      %51 = dma.hbm_to_vmem [thread:$0]  %s44, 512, %s46, [#allocation8], 128, 128, 8
    $region33: #{tpu_custom_call.1} parent=1 // pred_fallthru
      _
    // Predicated region
    $region34: #{tpu_custom_call.1} parent=1 // pred_check
      _
    $region35: #{tpu_custom_call.1} parent=1 // pred_check_branch
      %53 = sbr.rel (0) target = $region37
    $region36: #{tpu_custom_call.1} parent=1 // pred_region
      _
    $region37: #{tpu_custom_call.1} parent=1 // pred_fallthru
      _
    // Predicated region
    $region38: #{tpu_custom_call.1} parent=1 // pred_check
      _
    $region39: #{tpu_custom_call.1} parent=1 // pred_check_branch
      %55 = sbr.rel (0) target = $region41
    $region40: #{tpu_custom_call.1} parent=1 // pred_region
      %57 = dma.done [#allocation8], 512
    $region41: #{tpu_custom_call.1} parent=1 // pred_fallthru
      _
    %v58 = vld [vmem:[%s1] sm:$0xff]
    %v59 = vld [vmem:[%s3] sm:$0xff]
    %v60 = vld [vmem:[%s3 + $0x8] sm:$0xff]
    %v61 = vld [vmem:[%s4] sm:$0x1]
    %v63 = vperm.slane %v61, 0
    %vm65 = vcmask 130048
    %v67 = vsel %vm65, %v58, 0
    %69 = vmatpush.msra.mxu0 0.0
    %70 = vmatpush.msra.mxu0 0.0
    %71 = vmatpush.msra.mxu0 0.0
    %72 = vmatpush.msra.mxu0 0.0
    %73 = vmatpush.msra.mxu0 0.0
    %74 = vmatpush.msra.mxu0 0.0
    %75 = vmatpush.msra.mxu0 0.0
    %76 = vmatpush.msra.mxu0 0.0
    %77 = vmatpush.msra.mxu0 0.0
    %78 = vmatpush.msra.mxu0 0.0
    %79 = vmatpush.msra.mxu0 0.0
    %80 = vmatpush.msra.mxu0 0.0
    %81 = vmatpush.msra.mxu0 0.0
    %82 = vmatpush.msra.mxu0 0.0
    %83 = vmatpush.msra.mxu0 %v60
    %84 = vmatpush.msra.mxu0 %v59
    %85 = vmatmul.f32.gmra.mxu0 %v67
    %v86 = vpop.f32.mrf.mxu0
    %v87 = vadd.f32 %v63, %v86
    %88 = vdwg.mxu0
    %v89 = vld [vmem:[%s2] sm:$0xff]
    %v90 = vld [vmem:[%s2 + $0x8] sm:$0xff]
    %v91 = vld [vmem:[%s2 + $0x10] sm:$0xff]
    %v92 = vld [vmem:[%s2 + $0x18] sm:$0xff]
    %v93 = vld [vmem:[%s2 + $0x20] sm:$0xff]
    %v94 = vld [vmem:[%s2 + $0x28] sm:$0xff]
    %v95 = vld [vmem:[%s2 + $0x30] sm:$0xff]
    %v96 = vld [vmem:[%s5] sm:$0xff]
    %v97 = vld [vmem:[%s5 + $0x8] sm:$0xff]
    %v98 = vld [vmem:[%s5 + $0x10] sm:$0xff]
    %v99 = vld [vmem:[%s5 + $0x18] sm:$0xff]
    %v100 = vld [vmem:[%s6] sm:$0x1]
    %v102 = vperm.slane %v100, 0
    %vm104 = vcmask 261120
    %v106 = vsel %vm104, %v89, 0
    %v109 = vsel %vm104, %v90, 0
    %v112 = vsel %vm104, %v91, 0
    %v115 = vsel %vm104, %v92, 0
    %v118 = vsel %vm104, %v93, 0
    %v121 = vsel %vm104, %v94, 0
    %v124 = vsel %vm104, %v95, 0
    %126 = vmatpush.msra.mxu0 0.0
    %127 = vmatpush.msra.mxu0 0.0
    %128 = vmatpush.msra.mxu0 0.0
    %129 = vmatpush.msra.mxu0 0.0
    %130 = vmatpush.msra.mxu0 0.0
    %131 = vmatpush.msra.mxu0 0.0
    %132 = vmatpush.msra.mxu0 0.0
    %133 = vmatpush.msra.mxu0 0.0
    %134 = vmatpush.msra.mxu0 0.0
    %135 = vmatpush.msra.mxu0 0.0
    %136 = vmatpush.msra.mxu0 0.0
    %137 = vmatpush.msra.mxu0 0.0
    %138 = vmatpush.msra.mxu0 %v99
    %139 = vmatpush.msra.mxu0 %v98
    %140 = vmatpush.msra.mxu0 %v97
    %141 = vmatpush.msra.mxu0 %v96
    %142 = vmatmul.f32.gmra.mxu0 %v106
    %v143 = vpop.f32.mrf.mxu0
    %v144 = vadd.f32 %v102, %v143
    %145 = vmatmul.f32.gmra.mxu0 %v109
    %v146 = vpop.f32.mrf.mxu0
    %v147 = vadd.f32 %v102, %v146
    %148 = vmatmul.f32.gmra.mxu0 %v112
    %v149 = vpop.f32.mrf.mxu0
    %v150 = vadd.f32 %v102, %v149
    %151 = vmatmul.f32.gmra.mxu0 %v115
    %v152 = vpop.f32.mrf.mxu0
    %v153 = vadd.f32 %v102, %v152
    %154 = vmatmul.f32.gmra.mxu0 %v118
    %v155 = vpop.f32.mrf.mxu0
    %v156 = vadd.f32 %v102, %v155
    %157 = vmatmul.f32.gmra.mxu0 %v121
    %v158 = vpop.f32.mrf.mxu0
    %v159 = vadd.f32 %v102, %v158
    %160 = vmatmul.f32.gmra.mxu0 %v124
    %v161 = vpop.f32.mrf.mxu0
    %v162 = vadd.f32 %v102, %v161
    %163 = vdwg.mxu0
    %164 = vst [vmem:[#allocation2] sm:$0xff] %v144
    %165 = vst [vmem:[#allocation2 + $0x8] sm:$0xff] %v147
    %166 = vst [vmem:[#allocation2 + $0x10] sm:$0xff] %v150
    %167 = vst [vmem:[#allocation2 + $0x18] sm:$0xff] %v153
    %168 = vst [vmem:[#allocation2 + $0x20] sm:$0xff] %v156
    %169 = vst [vmem:[#allocation2 + $0x28] sm:$0xff] %v159
    %170 = vst [vmem:[#allocation2 + $0x30] sm:$0xff] %v162
    %v171 = vld [vmem:[%s7] sm:$0xff]
    %v172 = vld [vmem:[%s7 + $0x8] sm:$0xff]
    %v173 = vld [vmem:[%s7 + $0x10] sm:$0xff]
    %v174 = vld [vmem:[%s7 + $0x18] sm:$0xff]
    %v175 = vlaneseq
    %v176 = vshrl.u32 %v175, 7
    %s177 = sld [smem:[#allocation6]]
    %v178 = vstv %s177
    %vm179 = vcmp.lt.s32.totalorder %v176, %v178
    %v180 = vld [vmem:[#allocation2] sm:$0xff]
    %v182 = vsel %vm104, %v87, 0
    %184 = vmatpush.msra.mxu0 0.0
    %185 = vmatpush.msra.mxu0 0.0
    %186 = vmatpush.msra.mxu0 0.0
    %187 = vmatpush.msra.mxu0 0.0
    %188 = vmatpush.msra.mxu0 0.0
    %189 = vmatpush.msra.mxu0 0.0
    %190 = vmatpush.msra.mxu0 0.0
    %191 = vmatpush.msra.mxu0 0.0
    %192 = vmatpush.msra.mxu0 0.0
    %193 = vmatpush.msra.mxu0 0.0
    %194 = vmatpush.msra.mxu0 0.0
    %195 = vmatpush.msra.mxu0 0.0
    %196 = vmatpush.msra.mxu0 %v174
    %197 = vmatpush.msra.mxu0 %v173
    %198 = vmatpush.msra.mxu0 %v172
    %199 = vmatpush.msra.mxu0 %v171
    %200 = vmatmul.f32.gmra.mxu0 %v182
    %v201 = vpop.f32.mrf.mxu0
    %v202 = vadd.f32 0.0, %v201
    %203 = vdwg.mxu0
    %v204 = vadd.f32 %v180, %v202
    %v205 = vsub.f32 0.0, %v204
    %v206 = vmul.f32 %v205, 1.442695
    %v207 = vpow.pop %v206
    %v208 = vadd.f32 %v207, 1.0
    %v209 = vrcp.pop %v208
    %v210 = vmul.f32 %v208, %v209
    %v211 = vsub.f32 1.0, %v210
    %v212 = vmul.f32 %v209, %v211
    %v213 = vadd.f32 %v209, %v212
    %vm214 = vweird.f32 %v208
    %vm215 = vweird.f32 %v209
    %vm216 = vmor %vm214, %vm215
    %v217 = vsel %vm216, %v209, %v213
    %v218 = vand.u32 2147483647, %v208
    %vm219 = vcmp.eq.f32.partialorder %v218, 8.507059e+37
    %v220 = vand.u32 %v208, 2147483648
    %v221 = vor.u32 1.1754944e-38, %v220
    %v222 = vsel %vm219, %v221, %v217
    %v223 = vmul.f32 1.0, %v222
    %v224 = vtanh.pop %v204
    %v225 = vmul.f32 %v223, %v87
    %227 = vrot.lane.b32.xlu0 %v224, 64
    %v228 = vpop.permute.xlu0 %227
    %v230 = vmul.f32 %v223, %v228
    %232 = vrot.lane.b32.xlu0 %v230, 32
    %v233 = vpop.permute.xlu0 %232
    %v235 = vadd.f32 %v225, %v233
    %v236 = vtanh.pop %v235
    %238 = vrot.lane.b32.xlu0 %v236, 64
    %v239 = vpop.permute.xlu0 %238
    %v241 = vmul.f32 %v223, %v239
    %v242 = vsel %vm179, 1, 0
    %vm243 = vcmp.eq.s32.totalorder %v242, 1
    %v244 = vsel %vm243, %v241, 0.0
    %246 = vrot.lane.b32.xlu0 %v244, 32
    %v247 = vpop.permute.xlu0 %246
    %249 = vst.msk [vmem:[#allocation3] sm:$0xff] %vm104, %v247
    %v250 = vcvt.s32.f32 %v242
    %vm251 = vcmask 7168
    %252 = vst.msk [vmem:[#allocation4] sm:$0xff] %vm251, %v250
    %253 = vrot.lane.b32.xlu0 %v87, 96
    %v254 = vpop.permute.xlu0 %253
    %v256 = vsel %vm243, %v241, %v254
    %v257 = vsel %vm243, %v235, %v87
    %s258 = sld [smem:[#allocation6 + $0x1]]
    %v259 = vstv %s258
    %vm260 = vcmp.lt.s32.totalorder %v176, %v259
    %s261 = scalar_lea.vmem [#allocation2], 8
    %v262 = vld [vmem:[%s261] sm:$0xff]
    %264 = vrot.lane.b32.xlu0 %v256, 32
    %v265 = vpop.permute.xlu0 %264
    %v266 = vsel %vm104, %v265, 0
    %268 = vmatpush.msra.mxu0 0.0
    %269 = vmatpush.msra.mxu0 0.0
    %270 = vmatpush.msra.mxu0 0.0
    %271 = vmatpush.msra.mxu0 0.0
    %272 = vmatpush.msra.mxu0 0.0
    %273 = vmatpush.msra.mxu0 0.0
    %274 = vmatpush.msra.mxu0 0.0
    %275 = vmatpush.msra.mxu0 0.0
    %276 = vmatpush.msra.mxu0 0.0
    %277 = vmatpush.msra.mxu0 0.0
    %278 = vmatpush.msra.mxu0 0.0
    %279 = vmatpush.msra.mxu0 0.0
    %280 = vmatpush.msra.mxu0 %v174
    %281 = vmatpush.msra.mxu0 %v173
    %282 = vmatpush.msra.mxu0 %v172
    %283 = vmatpush.msra.mxu0 %v171
    %284 = vmatmul.f32.gmra.mxu0 %v266
    %v285 = vpop.f32.mrf.mxu0
    %v286 = vadd.f32 0.0, %v285
    %287 = vdwg.mxu0
    %v288 = vadd.f32 %v262, %v286
    %v289 = vsub.f32 0.0, %v288
    %v290 = vmul.f32 %v289, 1.442695
    %v291 = vpow.pop %v290
    %v292 = vadd.f32 %v291, 1.0
    %v293 = vrcp.pop %v292
    %v294 = vmul.f32 %v292, %v293
    %v295 = vsub.f32 1.0, %v294
    %v296 = vmul.f32 %v293, %v295
    %v297 = vadd.f32 %v293, %v296
    %vm298 = vweird.f32 %v292
    %vm299 = vweird.f32 %v293
    %vm300 = vmor %vm298, %vm299
    %v301 = vsel %vm300, %v293, %v297
    %v302 = vand.u32 2147483647, %v292
    %vm303 = vcmp.eq.f32.partialorder %v302, 8.507059e+37
    %v304 = vand.u32 %v292, 2147483648
    %v305 = vor.u32 1.1754944e-38, %v304
    %v306 = vsel %vm303, %v305, %v301
    %v307 = vmul.f32 1.0, %v306
    %v308 = vtanh.pop %v288
    %v309 = vmul.f32 %v307, %v257
    %311 = vrot.lane.b32.xlu0 %v308, 64
    %v312 = vpop.permute.xlu0 %311
    %v314 = vmul.f32 %v307, %v312
    %316 = vrot.lane.b32.xlu0 %v314, 32
    %v317 = vpop.permute.xlu0 %316
    %v319 = vadd.f32 %v309, %v317
    %v320 = vtanh.pop %v319
    %322 = vrot.lane.b32.xlu0 %v320, 64
    %v323 = vpop.permute.xlu0 %322
    %v325 = vmul.f32 %v307, %v323
    %v326 = vsel %vm260, 1, 0
    %vm327 = vcmp.eq.s32.totalorder %v326, 1
    %v328 = vsel %vm327, %v325, 0.0
    %330 = vrot.lane.b32.xlu0 %v328, 32
    %v331 = vpop.permute.xlu0 %330
    %s333 = scalar_lea.vmem [#allocation3], 8
    %334 = vst.msk [vmem:[%s333] sm:$0xff] %vm104, %v331
    %v335 = vcvt.s32.f32 %v326
    %s336 = scalar_lea.vmem [#allocation4], 8
    %337 = vst.msk [vmem:[%s336] sm:$0xff] %vm251, %v335
    %v338 = vsel %vm327, %v325, %v256
    %v339 = vsel %vm327, %v319, %v257
    %s340 = sld [smem:[#allocation6 + $0x2]]
    %v341 = vstv %s340
    %vm342 = vcmp.lt.s32.totalorder %v176, %v341
    %s343 = scalar_lea.vmem [#allocation2], 16
    %v344 = vld [vmem:[%s343] sm:$0xff]
    %346 = vrot.lane.b32.xlu0 %v338, 32
    %v347 = vpop.permute.xlu0 %346
    %v348 = vsel %vm104, %v347, 0
    %350 = vmatpush.msra.mxu0 0.0
    %351 = vmatpush.msra.mxu0 0.0
    %352 = vmatpush.msra.mxu0 0.0
    %353 = vmatpush.msra.mxu0 0.0
    %354 = vmatpush.msra.mxu0 0.0
    %355 = vmatpush.msra.mxu0 0.0
    %356 = vmatpush.msra.mxu0 0.0
    %357 = vmatpush.msra.mxu0 0.0
    %358 = vmatpush.msra.mxu0 0.0
    %359 = vmatpush.msra.mxu0 0.0
    %360 = vmatpush.msra.mxu0 0.0
    %361 = vmatpush.msra.mxu0 0.0
    %362 = vmatpush.msra.mxu0 %v174
    %363 = vmatpush.msra.mxu0 %v173
    %364 = vmatpush.msra.mxu0 %v172
    %365 = vmatpush.msra.mxu0 %v171
    %366 = vmatmul.f32.gmra.mxu0 %v348
    %v367 = vpop.f32.mrf.mxu0
    %v368 = vadd.f32 0.0, %v367
    %369 = vdwg.mxu0
    %v370 = vadd.f32 %v344, %v368
    %v371 = vsub.f32 0.0, %v370
    %v372 = vmul.f32 %v371, 1.442695
    %v373 = vpow.pop %v372
    %v374 = vadd.f32 %v373, 1.0
    %v375 = vrcp.pop %v374
    %v376 = vmul.f32 %v374, %v375
    %v377 = vsub.f32 1.0, %v376
    %v378 = vmul.f32 %v375, %v377
    %v379 = vadd.f32 %v375, %v378
    %vm380 = vweird.f32 %v374
    %vm381 = vweird.f32 %v375
    %vm382 = vmor %vm380, %vm381
    %v383 = vsel %vm382, %v375, %v379
    %v384 = vand.u32 2147483647, %v374
    %vm385 = vcmp.eq.f32.partialorder %v384, 8.507059e+37
    %v386 = vand.u32 %v374, 2147483648
    %v387 = vor.u32 1.1754944e-38, %v386
    %v388 = vsel %vm385, %v387, %v383
    %v389 = vmul.f32 1.0, %v388
    %v390 = vtanh.pop %v370
    %v391 = vmul.f32 %v389, %v339
    %393 = vrot.lane.b32.xlu0 %v390, 64
    %v394 = vpop.permute.xlu0 %393
    %v396 = vmul.f32 %v389, %v394
    %398 = vrot.lane.b32.xlu0 %v396, 32
    %v399 = vpop.permute.xlu0 %398
    %v401 = vadd.f32 %v391, %v399
    %v402 = vtanh.pop %v401
    %404 = vrot.lane.b32.xlu0 %v402, 64
    %v405 = vpop.permute.xlu0 %404
    %v407 = vmul.f32 %v389, %v405
    %v408 = vsel %vm342, 1, 0
    %vm409 = vcmp.eq.s32.totalorder %v408, 1
    %v410 = vsel %vm409, %v407, 0.0
    %412 = vrot.lane.b32.xlu0 %v410, 32
    %v413 = vpop.permute.xlu0 %412
    %s415 = scalar_lea.vmem [#allocation3], 16
    %416 = vst.msk [vmem:[%s415] sm:$0xff] %vm104, %v413
    %v417 = vcvt.s32.f32 %v408
    %s418 = scalar_lea.vmem [#allocation4], 16
    %419 = vst.msk [vmem:[%s418] sm:$0xff] %vm251, %v417
    %v420 = vsel %vm409, %v407, %v338
    %v421 = vsel %vm409, %v401, %v339
    %s422 = sld [smem:[#allocation6 + $0x3]]
    %v423 = vstv %s422
    %vm424 = vcmp.lt.s32.totalorder %v176, %v423
    %s425 = scalar_lea.vmem [#allocation2], 24
    %v426 = vld [vmem:[%s425] sm:$0xff]
    %428 = vrot.lane.b32.xlu0 %v420, 32
    %v429 = vpop.permute.xlu0 %428
    %v430 = vsel %vm104, %v429, 0
    %432 = vmatpush.msra.mxu0 0.0
    %433 = vmatpush.msra.mxu0 0.0
    %434 = vmatpush.msra.mxu0 0.0
    %435 = vmatpush.msra.mxu0 0.0
    %436 = vmatpush.msra.mxu0 0.0
    %437 = vmatpush.msra.mxu0 0.0
    %438 = vmatpush.msra.mxu0 0.0
    %439 = vmatpush.msra.mxu0 0.0
    %440 = vmatpush.msra.mxu0 0.0
    %441 = vmatpush.msra.mxu0 0.0
    %442 = vmatpush.msra.mxu0 0.0
    %443 = vmatpush.msra.mxu0 0.0
    %444 = vmatpush.msra.mxu0 %v174
    %445 = vmatpush.msra.mxu0 %v173
    %446 = vmatpush.msra.mxu0 %v172
    %447 = vmatpush.msra.mxu0 %v171
    %448 = vmatmul.f32.gmra.mxu0 %v430
    %v449 = vpop.f32.mrf.mxu0
    %v450 = vadd.f32 0.0, %v449
    %451 = vdwg.mxu0
    %v452 = vadd.f32 %v426, %v450
    %v453 = vsub.f32 0.0, %v452
    %v454 = vmul.f32 %v453, 1.442695
    %v455 = vpow.pop %v454
    %v456 = vadd.f32 %v455, 1.0
    %v457 = vrcp.pop %v456
    %v458 = vmul.f32 %v456, %v457
    %v459 = vsub.f32 1.0, %v458
    %v460 = vmul.f32 %v457, %v459
    %v461 = vadd.f32 %v457, %v460
    %vm462 = vweird.f32 %v456
    %vm463 = vweird.f32 %v457
    %vm464 = vmor %vm462, %vm463
    %v465 = vsel %vm464, %v457, %v461
    %v466 = vand.u32 2147483647, %v456
    %vm467 = vcmp.eq.f32.partialorder %v466, 8.507059e+37
    %v468 = vand.u32 %v456, 2147483648
    %v469 = vor.u32 1.1754944e-38, %v468
    %v470 = vsel %vm467, %v469, %v465
    %v471 = vmul.f32 1.0, %v470
    %v472 = vtanh.pop %v452
    %v473 = vmul.f32 %v471, %v421
    %475 = vrot.lane.b32.xlu0 %v472, 64
    %v476 = vpop.permute.xlu0 %475
    %v478 = vmul.f32 %v471, %v476
    %480 = vrot.lane.b32.xlu0 %v478, 32
    %v481 = vpop.permute.xlu0 %480
    %v483 = vadd.f32 %v473, %v481
    %v484 = vtanh.pop %v483
    %486 = vrot.lane.b32.xlu0 %v484, 64
    %v487 = vpop.permute.xlu0 %486
    %v489 = vmul.f32 %v471, %v487
    %v490 = vsel %vm424, 1, 0
    %vm491 = vcmp.eq.s32.totalorder %v490, 1
    %v492 = vsel %vm491, %v489, 0.0
    %494 = vrot.lane.b32.xlu0 %v492, 32
    %v495 = vpop.permute.xlu0 %494
    %s497 = scalar_lea.vmem [#allocation3], 24
    %498 = vst.msk [vmem:[%s497] sm:$0xff] %vm104, %v495
    %v499 = vcvt.s32.f32 %v490
    %s500 = scalar_lea.vmem [#allocation4], 24
    %501 = vst.msk [vmem:[%s500] sm:$0xff] %vm251, %v499
    %v502 = vsel %vm491, %v489, %v420
    %v503 = vsel %vm491, %v483, %v421
    %s504 = sld [smem:[#allocation6 + $0x4]]
    %v505 = vstv %s504
    %vm506 = vcmp.lt.s32.totalorder %v176, %v505
    %s507 = scalar_lea.vmem [#allocation2], 32
    %v508 = vld [vmem:[%s507] sm:$0xff]
    %510 = vrot.lane.b32.xlu0 %v502, 32
    %v511 = vpop.permute.xlu0 %510
    %v512 = vsel %vm104, %v511, 0
    %514 = vmatpush.msra.mxu0 0.0
    %515 = vmatpush.msra.mxu0 0.0
    %516 = vmatpush.msra.mxu0 0.0
    %517 = vmatpush.msra.mxu0 0.0
    %518 = vmatpush.msra.mxu0 0.0
    %519 = vmatpush.msra.mxu0 0.0
    %520 = vmatpush.msra.mxu0 0.0
    %521 = vmatpush.msra.mxu0 0.0
    %522 = vmatpush.msra.mxu0 0.0
    %523 = vmatpush.msra.mxu0 0.0
    %524 = vmatpush.msra.mxu0 0.0
    %525 = vmatpush.msra.mxu0 0.0
    %526 = vmatpush.msra.mxu0 %v174
    %527 = vmatpush.msra.mxu0 %v173
    %528 = vmatpush.msra.mxu0 %v172
    %529 = vmatpush.msra.mxu0 %v171
    %530 = vmatmul.f32.gmra.mxu0 %v512
    %v531 = vpop.f32.mrf.mxu0
    %v532 = vadd.f32 0.0, %v531
    %533 = vdwg.mxu0
    %v534 = vadd.f32 %v508, %v532
    %v535 = vsub.f32 0.0, %v534
    %v536 = vmul.f32 %v535, 1.442695
    %v537 = vpow.pop %v536
    %v538 = vadd.f32 %v537, 1.0
    %v539 = vrcp.pop %v538
    %v540 = vmul.f32 %v538, %v539
    %v541 = vsub.f32 1.0, %v540
    %v542 = vmul.f32 %v539, %v541
    %v543 = vadd.f32 %v539, %v542
    %vm544 = vweird.f32 %v538
    %vm545 = vweird.f32 %v539
    %vm546 = vmor %vm544, %vm545
    %v547 = vsel %vm546, %v539, %v543
    %v548 = vand.u32 2147483647, %v538
    %vm549 = vcmp.eq.f32.partialorder %v548, 8.507059e+37
    %v550 = vand.u32 %v538, 2147483648
    %v551 = vor.u32 1.1754944e-38, %v550
    %v552 = vsel %vm549, %v551, %v547
    %v553 = vmul.f32 1.0, %v552
    %v554 = vtanh.pop %v534
    %v555 = vmul.f32 %v553, %v503
    %557 = vrot.lane.b32.xlu0 %v554, 64
    %v558 = vpop.permute.xlu0 %557
    %v560 = vmul.f32 %v553, %v558
    %562 = vrot.lane.b32.xlu0 %v560, 32
    %v563 = vpop.permute.xlu0 %562
    %v565 = vadd.f32 %v555, %v563
    %v566 = vtanh.pop %v565
    %568 = vrot.lane.b32.xlu0 %v566, 64
    %v569 = vpop.permute.xlu0 %568
    %v571 = vmul.f32 %v553, %v569
    %v572 = vsel %vm506, 1, 0
    %vm573 = vcmp.eq.s32.totalorder %v572, 1
    %v574 = vsel %vm573, %v571, 0.0
    %576 = vrot.lane.b32.xlu0 %v574, 32
    %v577 = vpop.permute.xlu0 %576
    %s579 = scalar_lea.vmem [#allocation3], 32
    %580 = vst.msk [vmem:[%s579] sm:$0xff] %vm104, %v577
    %v581 = vcvt.s32.f32 %v572
    %s582 = scalar_lea.vmem [#allocation4], 32
    %583 = vst.msk [vmem:[%s582] sm:$0xff] %vm251, %v581
    %v584 = vsel %vm573, %v571, %v502
    %v585 = vsel %vm573, %v565, %v503
    %s586 = sld [smem:[#allocation6 + $0x5]]
    %v587 = vstv %s586
    %vm588 = vcmp.lt.s32.totalorder %v176, %v587
    %s589 = scalar_lea.vmem [#allocation2], 40
    %v590 = vld [vmem:[%s589] sm:$0xff]
    %592 = vrot.lane.b32.xlu0 %v584, 32
    %v593 = vpop.permute.xlu0 %592
    %v594 = vsel %vm104, %v593, 0
    %596 = vmatpush.msra.mxu0 0.0
    %597 = vmatpush.msra.mxu0 0.0
    %598 = vmatpush.msra.mxu0 0.0
    %599 = vmatpush.msra.mxu0 0.0
    %600 = vmatpush.msra.mxu0 0.0
    %601 = vmatpush.msra.mxu0 0.0
    %602 = vmatpush.msra.mxu0 0.0
    %603 = vmatpush.msra.mxu0 0.0
    %604 = vmatpush.msra.mxu0 0.0
    %605 = vmatpush.msra.mxu0 0.0
    %606 = vmatpush.msra.mxu0 0.0
    %607 = vmatpush.msra.mxu0 0.0
    %608 = vmatpush.msra.mxu0 %v174
    %609 = vmatpush.msra.mxu0 %v173
    %610 = vmatpush.msra.mxu0 %v172
    %611 = vmatpush.msra.mxu0 %v171
    %612 = vmatmul.f32.gmra.mxu0 %v594
    %v613 = vpop.f32.mrf.mxu0
    %v614 = vadd.f32 0.0, %v613
    %615 = vdwg.mxu0
    %v616 = vadd.f32 %v590, %v614
    %v617 = vsub.f32 0.0, %v616
    %v618 = vmul.f32 %v617, 1.442695
    %v619 = vpow.pop %v618
    %v620 = vadd.f32 %v619, 1.0
    %v621 = vrcp.pop %v620
    %v622 = vmul.f32 %v620, %v621
    %v623 = vsub.f32 1.0, %v622
    %v624 = vmul.f32 %v621, %v623
    %v625 = vadd.f32 %v621, %v624
    %vm626 = vweird.f32 %v620
    %vm627 = vweird.f32 %v621
    %vm628 = vmor %vm626, %vm627
    %v629 = vsel %vm628, %v621, %v625
    %v630 = vand.u32 2147483647, %v620
    %vm631 = vcmp.eq.f32.partialorder %v630, 8.507059e+37
    %v632 = vand.u32 %v620, 2147483648
    %v633 = vor.u32 1.1754944e-38, %v632
    %v634 = vsel %vm631, %v633, %v629
    %v635 = vmul.f32 1.0, %v634
    %v636 = vtanh.pop %v616
    %v637 = vmul.f32 %v635, %v585
    %639 = vrot.lane.b32.xlu0 %v636, 64
    %v640 = vpop.permute.xlu0 %639
    %v642 = vmul.f32 %v635, %v640
    %644 = vrot.lane.b32.xlu0 %v642, 32
    %v645 = vpop.permute.xlu0 %644
    %v647 = vadd.f32 %v637, %v645
    %v648 = vtanh.pop %v647
    %650 = vrot.lane.b32.xlu0 %v648, 64
    %v651 = vpop.permute.xlu0 %650
    %v653 = vmul.f32 %v635, %v651
    %v654 = vsel %vm588, 1, 0
    %vm655 = vcmp.eq.s32.totalorder %v654, 1
    %v656 = vsel %vm655, %v653, 0.0
    %658 = vrot.lane.b32.xlu0 %v656, 32
    %v659 = vpop.permute.xlu0 %658
    %s661 = scalar_lea.vmem [#allocation3], 40
    %662 = vst.msk [vmem:[%s661] sm:$0xff] %vm104, %v659
    %v663 = vcvt.s32.f32 %v654
    %s664 = scalar_lea.vmem [#allocation4], 40
    %665 = vst.msk [vmem:[%s664] sm:$0xff] %vm251, %v663
    %v666 = vsel %vm655, %v653, %v584
    %v667 = vsel %vm655, %v647, %v585
    %s668 = sld [smem:[#allocation6 + $0x6]]
    %v669 = vstv %s668
    %vm670 = vcmp.lt.s32.totalorder %v176, %v669
    %s671 = scalar_lea.vmem [#allocation2], 48
    %v672 = vld [vmem:[%s671] sm:$0xff]
    %674 = vrot.lane.b32.xlu0 %v666, 32
    %v675 = vpop.permute.xlu0 %674
    %v676 = vsel %vm104, %v675, 0
    %678 = vmatpush.msra.mxu0 0.0
    %679 = vmatpush.msra.mxu0 0.0
    %680 = vmatpush.msra.mxu0 0.0
    %681 = vmatpush.msra.mxu0 0.0
    %682 = vmatpush.msra.mxu0 0.0
    %683 = vmatpush.msra.mxu0 0.0
    %684 = vmatpush.msra.mxu0 0.0
    %685 = vmatpush.msra.mxu0 0.0
    %686 = vmatpush.msra.mxu0 0.0
    %687 = vmatpush.msra.mxu0 0.0
    %688 = vmatpush.msra.mxu0 0.0
    %689 = vmatpush.msra.mxu0 0.0
    %690 = vmatpush.msra.mxu0 %v174
    %691 = vmatpush.msra.mxu0 %v173
    %692 = vmatpush.msra.mxu0 %v172
    %693 = vmatpush.msra.mxu0 %v171
    %694 = vmatmul.f32.gmra.mxu0 %v676
    %v695 = vpop.f32.mrf.mxu0
    %v696 = vadd.f32 0.0, %v695
    %697 = vdwg.mxu0
    %v698 = vadd.f32 %v672, %v696
    %v699 = vsub.f32 0.0, %v698
    %v700 = vmul.f32 %v699, 1.442695
    %v701 = vpow.pop %v700
    %v702 = vadd.f32 %v701, 1.0
    %v703 = vrcp.pop %v702
    %v704 = vmul.f32 %v702, %v703
    %v705 = vsub.f32 1.0, %v704
    %v706 = vmul.f32 %v703, %v705
    %v707 = vadd.f32 %v703, %v706
    %vm708 = vweird.f32 %v702
    %vm709 = vweird.f32 %v703
    %vm710 = vmor %vm708, %vm709
    %v711 = vsel %vm710, %v703, %v707
    %v712 = vand.u32 2147483647, %v702
    %vm713 = vcmp.eq.f32.partialorder %v712, 8.507059e+37
    %v714 = vand.u32 %v702, 2147483648
    %v715 = vor.u32 1.1754944e-38, %v714
    %v716 = vsel %vm713, %v715, %v711
    %v717 = vmul.f32 1.0, %v716
    %v718 = vtanh.pop %v698
    %v719 = vmul.f32 %v717, %v667
    %721 = vrot.lane.b32.xlu0 %v718, 64
    %v722 = vpop.permute.xlu0 %721
    %v724 = vmul.f32 %v717, %v722
    %726 = vrot.lane.b32.xlu0 %v724, 32
    %v727 = vpop.permute.xlu0 %726
    %v729 = vadd.f32 %v719, %v727
    %v730 = vtanh.pop %v729
    %732 = vrot.lane.b32.xlu0 %v730, 64
    %v733 = vpop.permute.xlu0 %732
    %v735 = vmul.f32 %v717, %v733
    %v736 = vsel %vm670, 1, 0
    %vm737 = vcmp.eq.s32.totalorder %v736, 1
    %v738 = vsel %vm737, %v735, 0.0
    %740 = vrot.lane.b32.xlu0 %v738, 32
    %v741 = vpop.permute.xlu0 %740
    %s743 = scalar_lea.vmem [#allocation3], 48
    %744 = vst.msk [vmem:[%s743] sm:$0xff] %vm104, %v741
    %v745 = vcvt.s32.f32 %v736
    %s746 = scalar_lea.vmem [#allocation4], 48
    %747 = vst.msk [vmem:[%s746] sm:$0xff] %vm251, %v745
    %v748 = vld [vmem:[#allocation3] sm:$0xff]
    %v749 = vld [vmem:[#allocation3 + $0x8] sm:$0xff]
    %v750 = vld [vmem:[#allocation3 + $0x10] sm:$0xff]
    %v751 = vld [vmem:[#allocation3 + $0x18] sm:$0xff]
    %v752 = vld [vmem:[#allocation3 + $0x20] sm:$0xff]
    %v753 = vld [vmem:[#allocation3 + $0x28] sm:$0xff]
    %v754 = vld [vmem:[#allocation3 + $0x30] sm:$0xff]
    %v755 = vld [vmem:[#allocation7] sm:$0xff]
    %v756 = vld [vmem:[#allocation7 + $0x8] sm:$0xff]
    %v757 = vld [vmem:[#allocation7 + $0x10] sm:$0xff]
    %v758 = vld [vmem:[#allocation7 + $0x18] sm:$0xff]
    %v759 = vld [vmem:[#allocation4] sm:$0xff]
    %v760 = vld [vmem:[#allocation4 + $0x8] sm:$0xff]
    %v761 = vld [vmem:[#allocation4 + $0x10] sm:$0xff]
    %v762 = vld [vmem:[#allocation4 + $0x18] sm:$0xff]
    %v763 = vld [vmem:[#allocation4 + $0x20] sm:$0xff]
    %v764 = vld [vmem:[#allocation4 + $0x28] sm:$0xff]
    %v765 = vld [vmem:[#allocation4 + $0x30] sm:$0xff]
    %v766 = vld [vmem:[%s9] sm:$0x1]
    %768 = vset.pattern.permute.xlu0 0
    %769 = vperm.xlu0 %768, %v759
    %v770 = vpop.permute.xlu0 %769
    %773 = vset.pattern.permute.xlu0 0
    %774 = vperm.xlu0 %773, %v760
    %v775 = vpop.permute.xlu0 %774
    %778 = vset.pattern.permute.xlu0 0
    %779 = vperm.xlu0 %778, %v761
    %v780 = vpop.permute.xlu0 %779
    %783 = vset.pattern.permute.xlu0 0
    %784 = vperm.xlu0 %783, %v762
    %v785 = vpop.permute.xlu0 %784
    %788 = vset.pattern.permute.xlu0 0
    %789 = vperm.xlu0 %788, %v763
    %v790 = vpop.permute.xlu0 %789
    %793 = vset.pattern.permute.xlu0 0
    %794 = vperm.xlu0 %793, %v764
    %v795 = vpop.permute.xlu0 %794
    %798 = vset.pattern.permute.xlu0 0
    %799 = vperm.xlu0 %798, %v765
    %v800 = vpop.permute.xlu0 %799
    %v803 = vperm.slane %v766, 0
    %v805 = vmul.f32 %v770, %v803
    %v806 = vmul.f32 %v775, %v803
    %v807 = vmul.f32 %v780, %v803
    %v808 = vmul.f32 %v785, %v803
    %v809 = vmul.f32 %v790, %v803
    %v810 = vmul.f32 %v795, %v803
    %v811 = vmul.f32 %v800, %v803
    %v813 = vsel %vm104, %v748, 0
    %v816 = vsel %vm104, %v749, 0
    %v819 = vsel %vm104, %v750, 0
    %v822 = vsel %vm104, %v751, 0
    %v825 = vsel %vm104, %v752, 0
    %v828 = vsel %vm104, %v753, 0
    %v831 = vsel %vm104, %v754, 0
    %833 = vmatpush.msra.mxu0 0.0
    %834 = vmatpush.msra.mxu0 0.0
    %835 = vmatpush.msra.mxu0 0.0
    %836 = vmatpush.msra.mxu0 0.0
    %837 = vmatpush.msra.mxu0 0.0
    %838 = vmatpush.msra.mxu0 0.0
    %839 = vmatpush.msra.mxu0 0.0
    %840 = vmatpush.msra.mxu0 0.0
    %841 = vmatpush.msra.mxu0 0.0
    %842 = vmatpush.msra.mxu0 0.0
    %843 = vmatpush.msra.mxu0 0.0
    %844 = vmatpush.msra.mxu0 0.0
    %845 = vmatpush.msra.mxu0 %v758
    %846 = vmatpush.msra.mxu0 %v757
    %847 = vmatpush.msra.mxu0 %v756
    %848 = vmatpush.msra.mxu0 %v755
    %849 = vmatmul.f32.gmra.mxu0 %v813
    %v850 = vpop.f32.mrf.mxu0
    %v851 = vadd.f32 %v805, %v850
    %852 = vmatmul.f32.gmra.mxu0 %v816
    %v853 = vpop.f32.mrf.mxu0
    %v854 = vadd.f32 %v806, %v853
    %855 = vmatmul.f32.gmra.mxu0 %v819
    %v856 = vpop.f32.mrf.mxu0
    %v857 = vadd.f32 %v807, %v856
    %858 = vmatmul.f32.gmra.mxu0 %v822
    %v859 = vpop.f32.mrf.mxu0
    %v860 = vadd.f32 %v808, %v859
    %861 = vmatmul.f32.gmra.mxu0 %v825
    %v862 = vpop.f32.mrf.mxu0
    %v863 = vadd.f32 %v809, %v862
    %864 = vmatmul.f32.gmra.mxu0 %v828
    %v865 = vpop.f32.mrf.mxu0
    %v866 = vadd.f32 %v810, %v865
    %867 = vmatmul.f32.gmra.mxu0 %v831
    %v868 = vpop.f32.mrf.mxu0
    %v869 = vadd.f32 %v811, %v868
    %870 = vdwg.mxu0
    %871 = vst [vmem:[#allocation10] sm:$0xff] %v851
    %872 = vst [vmem:[#allocation10 + $0x8] sm:$0xff] %v854
    %873 = vst [vmem:[#allocation10 + $0x10] sm:$0xff] %v857
    %874 = vst [vmem:[#allocation10 + $0x18] sm:$0xff] %v860
    %875 = vst [vmem:[#allocation10 + $0x20] sm:$0xff] %v863
    %876 = vst [vmem:[#allocation10 + $0x28] sm:$0xff] %v866
    %877 = vst [vmem:[#allocation10 + $0x30] sm:$0xff] %v869
    %878 = vst [vmem:[#allocation10 + $0x38] sm:$0xff] 0.0
    // Predicated region
    $region42: #{tpu_custom_call.1} parent=1 // pred_check
      _
    $region43: #{tpu_custom_call.1} parent=1 // pred_check_branch
      %880 = sbr.rel (0) target = $region45
    $region44: #{tpu_custom_call.1} parent=1 // pred_region
      %882 = vsyncadd [#allocation9], 0
      %s883 = sshll.u32 [#allocation10], 4
      %s884 = int_to_ptr.vmem [resolvable:$true] %s883
      %s885 = sshll.u32 %s10, 4
      %s886 = int_to_ptr.hbm [resolvable:$true] %s885
      %891 = dma.vmem_to_hbm [thread:$0]  %s884, 1024, %s886, [#allocation9], 128, 128, 8
    $region45: #{tpu_custom_call.1} parent=1 // pred_fallthru
      _
    // Predicated region
    $region46: #{tpu_custom_call.1} parent=1 // pred_check
      _
    $region47: #{tpu_custom_call.1} parent=1 // pred_check_branch
      %893 = sbr.rel (0) target = $region49
    $region48: #{tpu_custom_call.1} parent=1 // pred_region
      %895 = dma.done [#allocation9], 1024
    $region49: #{tpu_custom_call.1} parent=1 // pred_fallthru
      _
    %896 = vsyncpa [#allocation8], 1
    %897 = vsyncpa [#allocation9], 1

</llo_original>
